<compile_context>
chip_gen: v7x
topology: tpu7x:2x2x1
jax: 0.10.0
libtpu: 0.0.40
codegen_flags: <defaults>
</compile_context>

<pallas_src>
import functools

import jax
import jax.numpy as jnp
from jax import lax
from jax.experimental import pallas as pl
from jax.experimental.pallas import tpu as pltpu

C = 32      # channels (fixed by the module: Conv1d(32,32), LSTM(32,32))
H = 32      # LSTM hidden size
K = 5       # conv kernel size
PAD = 2     # conv padding
POOL = 3    # maxpool kernel size (stride 1)
EPS = 1e-5  # BatchNorm eps


# ----------------------------------------------------------------- kernel ----
def fused_resdual_kernel(x_ref, w1_ref, t1_ref, w2l_ref, b2l_ref, whh_ref, o_ref,
                         *, B, Lp):
    # all arrays are 2-D and TIME-MAJOR: row index = t*B + b.
    #   x_ref  : (L*B,  C)   input
    #   w1_ref : (K*C,  C)   conv1 weights with BN1 scale folded into the columns
    #   t1_ref : (1,    C)   conv1 bias + BN1 shift
    #   w2l_ref: (K*C, 4H)   conv2 * BN2-scale * W_ih^T (BN2 + LSTM input proj folded)
    #   b2l_ref: (1,   4H)   (conv2 bias + BN2 shift) @ W_ih^T + b_ih + b_hh
    #   whh_ref: (H,   4H)   recurrent weights (PyTorch gate order i, f, g, o)
    #   o_ref  : (Lp*B, C)   pooled + LSTM hidden states
    Cc = x_ref.shape[1]
    n = Lp * B

    x = x_ref[...]
    # MaxPool1d(3, stride 1): shifting by B rows shifts time by 1 in this layout (VPU).
    pooled = jnp.maximum(jnp.maximum(x[0:n, :], x[B:n + B, :]),
                         x[2 * B:n + 2 * B, :])                        # (Lp*B, C)

    zpad = jnp.zeros((PAD * B, Cc), jnp.float32)

    def im2col(rows):
        # zero-pad PAD time steps on each side, then stack the K taps on lanes.
        padded = jnp.concatenate([zpad, rows, zpad], axis=0)           # ((Lp+4)*B, C)
        return jnp.concatenate([padded[k * B:k * B + n, :] for k in range(K)],
                               axis=1)                                 # (Lp*B, K*C)

    # conv1 + BN1 (scale folded into w1 columns, conv bias + BN shift folded into t1)
    y1 = jnp.dot(im2col(pooled), w1_ref[...],
                 preferred_element_type=jnp.float32) + t1_ref[...]     # (Lp*B, C)
    # conv2 + BN2 + LSTM input projection in one matmul (y2 is never materialized)
    xp = jnp.dot(im2col(y1), w2l_ref[...],
                 preferred_element_type=jnp.float32) + b2l_ref[...]    # (Lp*B, 4H)

    # ---- batched LSTM recurrence, statically unrolled over time --------------
    whh = whh_ref[...].astype(jnp.bfloat16)          # bf16 MXU operand, hoisted
    h = jnp.zeros((B, H), jnp.float32)
    c = jnp.zeros((B, H), jnp.float32)
    hs = []
    for t in range(Lp):
        x_t = xp[t * B:(t + 1) * B, :]               # contiguous sublane slice
        gates = x_t + jnp.dot(h.astype(jnp.bfloat16), whh,
                              preferred_element_type=jnp.float32)      # (B, 4H)
        # full-vreg EUP pushes; lanes whose other nonlinearity is used are discarded
        # by the slices below (numerically correct — do not split into 4 narrow pushes).
        sg = jax.nn.sigmoid(gates)
        tg = jnp.tanh(gates)
        i = sg[:, 0:H]                               # PyTorch gate order: i, f, g, o
        f = sg[:, H:2 * H]
        g = tg[:, 2 * H:3 * H]
        o = sg[:, 3 * H:4 * H]
        c = f * c + i * g
        h = o * jnp.tanh(c)
        hs.append(h)

    # one fused store: residual add + every time step at once (no per-step stores).
    o_ref[...] = pooled + jnp.concatenate(hs, axis=0)


# ---------------------------------------------------------------- wrapper ----
def resdual_block(x_ncl, kp):
    B, cin, L = x_ncl.shape
    assert cin == C
    Lp = L - (POOL - 1)
    # time-major rows (row = t*B + b): im2col taps and the per-step LSTM reads become
    # contiguous sublane slices inside the kernel.
    x_tm = jnp.transpose(x_ncl, (2, 0, 1)).reshape(L * B, C).astype(jnp.float32)

    vmem = lambda: pl.BlockSpec(memory_space=pltpu.MemorySpace.VMEM)
    out_tm = pl.pallas_call(
        functools.partial(fused_resdual_kernel, B=B, Lp=Lp),
        out_shape=jax.ShapeDtypeStruct((Lp * B, C), jnp.float32),
        in_specs=[vmem() for _ in range(6)],
        out_specs=vmem(),
    )(x_tm, kp["w1s"], kp["t1"], kp["w2l"], kp["b2l"], kp["whh_t"])

    return jnp.transpose(out_tm.reshape(Lp, B, C), (1, 2, 0))          # (B, C, Lp)


# ------------------------------------------------------------- parameters ----
def make_raw_params(key):
    # PyTorch-layout parameters of the module (BN in eval mode: running stats).
    ks = jax.random.split(key, 16)
    rnd = lambda k, s, scale=0.1: scale * jax.random.normal(k, s, jnp.float32)

    def bn(kg, kb, km, kv):
        return dict(gamma=1.0 + rnd(kg, (C,)), beta=rnd(kb, (C,)), mean=rnd(km, (C,)),
                    var=1.0 + 0.1 * jnp.abs(jax.random.normal(kv, (C,), jnp.float32)))

    return dict(
        conv1_w=rnd(ks[0], (C, C, K)), conv1_b=rnd(ks[1], (C,)),
        bn1=bn(ks[2], ks[3], ks[4], ks[5]),
        conv2_w=rnd(ks[6], (C, C, K)), conv2_b=rnd(ks[7], (C,)),
        bn2=bn(ks[8], ks[9], ks[10], ks[11]),
        w_ih=rnd(ks[12], (4 * H, C)), w_hh=rnd(ks[13], (4 * H, H)),
        b_ih=rnd(ks[14], (4 * H,)), b_hh=rnd(ks[15], (4 * H,)),
    )


def prepare_kernel_params(raw):
    # One-time f32 folds (exact up to matmul reassociation):
    #   BN(z) = z*s + (beta - mean*s),  s = gamma * rsqrt(var + eps)
    #   conv1+BN1        -> w1s = flat(w1)*s1,  t1 = conv1_b*s1 + beta1 - mean1*s1
    #   conv2+BN2+W_ih   -> w2l = (flat(w2)*s2) @ W_ih^T,
    #                       b2l = t2 @ W_ih^T + b_ih + b_hh
    def flat(w):                            # torch (Cout, Cin, K) -> (K*Cin, Cout)
        return jnp.transpose(w, (2, 1, 0)).reshape(K * C, C)

    def fold(bnp, conv_b):
        s = bnp["gamma"] * lax.rsqrt(bnp["var"] + EPS)
        t = conv_b * s + bnp["beta"] - bnp["mean"] * s
        return s, t

    s1, t1 = fold(raw["bn1"], raw["conv1_b"])
    s2, t2 = fold(raw["bn2"], raw["conv2_b"])
    wih_t = raw["w_ih"].T                                             # (C, 4H)
    return dict(
        w1s=flat(raw["conv1_w"]) * s1[None, :],                       # (K*C, C)
        t1=t1[None, :],                                               # (1, C)
        w2l=(flat(raw["conv2_w"]) * s2[None, :]) @ wih_t,             # (K*C, 4H)
        b2l=(t2[None, :] @ wih_t) + (raw["b_ih"] + raw["b_hh"])[None, :],   # (1, 4H)
        whh_t=raw["w_hh"].T,                                          # (H, 4H)
    )


# ----------------------------------------------------------- pure-JAX ref ----
def resdual_block_ref(x_ncl, raw):
    # faithful pure-JAX forward of the PyTorch module (eval-mode BatchNorm), all f32.
    xb = jnp.transpose(x_ncl, (0, 2, 1)).astype(jnp.float32)          # (B, L, C)
    Bsz, L, _ = xb.shape
    Lp = L - (POOL - 1)
    pooled = jnp.max(jnp.stack([xb[:, k:k + Lp, :] for k in range(POOL)], 0), 0)

    def conv_bn(y, w, b, bnp):
        wf = jnp.transpose(w, (2, 1, 0)).reshape(K * C, C)
        yp = jnp.pad(y, ((0, 0), (PAD, PAD), (0, 0)))
        cols = jnp.concatenate([yp[:, k:k + Lp, :] for k in range(K)], axis=2)
        z = jnp.einsum("blk,kc->blc", cols, wf) + b
        return (z - bnp["mean"]) * (bnp["gamma"] * lax.rsqrt(bnp["var"] + EPS)) \
            + bnp["beta"]

    y = conv_bn(pooled, raw["conv1_w"], raw["conv1_b"], raw["bn1"])
    y = conv_bn(y, raw["conv2_w"], raw["conv2_b"], raw["bn2"])

    xp = jnp.einsum("blc,gc->blg", y, raw["w_ih"]) + raw["b_ih"] + raw["b_hh"]
    h = jnp.zeros((Bsz, H), jnp.float32)
    c = jnp.zeros((Bsz, H), jnp.float32)
    hs = []
    for t in range(Lp):
        gates = xp[:, t, :] + h @ raw["w_hh"].T
        i = jax.nn.sigmoid(gates[:, 0:H])
        f = jax.nn.sigmoid(gates[:, H:2 * H])
        g = jnp.tanh(gates[:, 2 * H:3 * H])
        o = jax.nn.sigmoid(gates[:, 3 * H:4 * H])
        c = f * c + i * g
        h = o * jnp.tanh(c)
        hs.append(h)
    out_blc = pooled + jnp.stack(hs, axis=1)                          # (B, Lp, C)
    return jnp.transpose(out_blc, (0, 2, 1))


if __name__ == "__main__":
    B, L = 2, 18                 # channels fixed at 32 by the module; L -> L-2 after pool
    key = jax.random.PRNGKey(0)
    kx, kp = jax.random.split(key)
    x = jax.random.normal(kx, (B, C, L), jnp.float32)
    raw = make_raw_params(kp)
    params = prepare_kernel_params(raw)

    out = jax.jit(resdual_block)(x, params)
    jax.block_until_ready(out)

    ref = resdual_block_ref(x, raw)
    assert out.shape == (B, C, L - 2)
    assert bool(jnp.all(jnp.isfinite(out)))
    # tolerance covers bf16 rounding of the recurrent-matmul operands and the
    # f32 matmul reassociation from folding BN2 + W_ih into conv2's weights.
    assert bool(jnp.allclose(out, ref, rtol=1e-2, atol=1e-2)), \
        float(jnp.max(jnp.abs(out - ref)))
    print("KERNEL_OK")
</pallas_src>

<mosaic_0001>
module attributes {stable_mosaic.version = 11 : i64} {
  func.func @fused_resdual_kernel(%arg0: memref<36x32xf32, #tpu.memory_space<vmem>>, %arg1: memref<160x32xf32, #tpu.memory_space<vmem>>, %arg2: memref<1x32xf32, #tpu.memory_space<vmem>>, %arg3: memref<160x128xf32, #tpu.memory_space<vmem>>, %arg4: memref<1x128xf32, #tpu.memory_space<vmem>>, %arg5: memref<32x128xf32, #tpu.memory_space<vmem>>, %arg6: memref<32x32xf32, #tpu.memory_space<vmem>>) attributes {dimension_semantics = [], scalar_prefetch = 0 : i64, scratch_operands = 0 : i64, tpu.core_type = #tpu.core_type<tc>} {
    %c0 = arith.constant 0 : index
    %c0_0 = arith.constant 0 : index
    %0 = vector.load %arg0[%c0, %c0_0] : memref<36x32xf32, #tpu.memory_space<vmem>>, vector<36x32xf32>
    %1 = vector.extract_strided_slice %0 {offsets = [0, 0], sizes = [32, 32], strides = [1, 1]} : vector<36x32xf32> to vector<32x32xf32>
    %2 = vector.extract_strided_slice %0 {offsets = [2, 0], sizes = [32, 32], strides = [1, 1]} : vector<36x32xf32> to vector<32x32xf32>
    %3 = arith.maximumf %1, %2 : vector<32x32xf32>
    %4 = vector.extract_strided_slice %0 {offsets = [4, 0], sizes = [32, 32], strides = [1, 1]} : vector<36x32xf32> to vector<32x32xf32>
    %5 = arith.maximumf %3, %4 : vector<32x32xf32>
    %cst = arith.constant 0.000000e+00 : f32
    %6 = vector.broadcast %cst : f32 to vector<4x32xf32>
    %7 = tpu.concatenate %6, %5, %6 in 0 : vector<4x32xf32>, vector<32x32xf32>, vector<4x32xf32> -> vector<40x32xf32>
    %8 = vector.extract_strided_slice %7 {offsets = [0, 0], sizes = [32, 32], strides = [1, 1]} : vector<40x32xf32> to vector<32x32xf32>
    %9 = vector.extract_strided_slice %7 {offsets = [2, 0], sizes = [32, 32], strides = [1, 1]} : vector<40x32xf32> to vector<32x32xf32>
    %10 = vector.extract_strided_slice %7 {offsets = [4, 0], sizes = [32, 32], strides = [1, 1]} : vector<40x32xf32> to vector<32x32xf32>
    %11 = vector.extract_strided_slice %7 {offsets = [6, 0], sizes = [32, 32], strides = [1, 1]} : vector<40x32xf32> to vector<32x32xf32>
    %12 = vector.extract_strided_slice %7 {offsets = [8, 0], sizes = [32, 32], strides = [1, 1]} : vector<40x32xf32> to vector<32x32xf32>
    %13 = tpu.concatenate %8, %9, %10, %11, %12 in 1 : vector<32x32xf32>, vector<32x32xf32>, vector<32x32xf32>, vector<32x32xf32>, vector<32x32xf32> -> vector<32x160xf32>
    %c0_1 = arith.constant 0 : index
    %c0_2 = arith.constant 0 : index
    %14 = vector.load %arg1[%c0_1, %c0_2] : memref<160x32xf32, #tpu.memory_space<vmem>>, vector<160x32xf32>
    %cst_3 = arith.constant dense<0.000000e+00> : vector<32x32xf32>
    %15 = tpu.matmul %13, %14, %cst_3 {dimension_numbers = #tpu.dot_dimension_numbers<[1], [0], [0], [1], [0, 0, 1, 1], [], []>} : vector<32x160xf32>, vector<160x32xf32>, vector<32x32xf32> -> vector<32x32xf32>
    %c0_4 = arith.constant 0 : index
    %c0_5 = arith.constant 0 : index
    %16 = vector.load %arg2[%c0_4, %c0_5] : memref<1x32xf32, #tpu.memory_space<vmem>>, vector<1x32xf32>
    %17 = vector.broadcast %16 : vector<1x32xf32> to vector<32x32xf32>
    %18 = arith.addf %15, %17 : vector<32x32xf32>
    %19 = tpu.concatenate %6, %18, %6 in 0 : vector<4x32xf32>, vector<32x32xf32>, vector<4x32xf32> -> vector<40x32xf32>
    %20 = vector.extract_strided_slice %19 {offsets = [0, 0], sizes = [32, 32], strides = [1, 1]} : vector<40x32xf32> to vector<32x32xf32>
    %21 = vector.extract_strided_slice %19 {offsets = [2, 0], sizes = [32, 32], strides = [1, 1]} : vector<40x32xf32> to vector<32x32xf32>
    %22 = vector.extract_strided_slice %19 {offsets = [4, 0], sizes = [32, 32], strides = [1, 1]} : vector<40x32xf32> to vector<32x32xf32>
    %23 = vector.extract_strided_slice %19 {offsets = [6, 0], sizes = [32, 32], strides = [1, 1]} : vector<40x32xf32> to vector<32x32xf32>
    %24 = vector.extract_strided_slice %19 {offsets = [8, 0], sizes = [32, 32], strides = [1, 1]} : vector<40x32xf32> to vector<32x32xf32>
    %25 = tpu.concatenate %20, %21, %22, %23, %24 in 1 : vector<32x32xf32>, vector<32x32xf32>, vector<32x32xf32>, vector<32x32xf32>, vector<32x32xf32> -> vector<32x160xf32>
    %c0_6 = arith.constant 0 : index
    %c0_7 = arith.constant 0 : index
    %26 = vector.load %arg3[%c0_6, %c0_7] : memref<160x128xf32, #tpu.memory_space<vmem>>, vector<160x128xf32>
    %cst_8 = arith.constant dense<0.000000e+00> : vector<32x128xf32>
    %27 = tpu.matmul %25, %26, %cst_8 {dimension_numbers = #tpu.dot_dimension_numbers<[1], [0], [0], [1], [0, 0, 1, 1], [], []>} : vector<32x160xf32>, vector<160x128xf32>, vector<32x128xf32> -> vector<32x128xf32>
    %c0_9 = arith.constant 0 : index
    %c0_10 = arith.constant 0 : index
    %28 = vector.load %arg4[%c0_9, %c0_10] : memref<1x128xf32, #tpu.memory_space<vmem>>, vector<1x128xf32>
    %29 = vector.broadcast %28 : vector<1x128xf32> to vector<32x128xf32>
    %30 = arith.addf %27, %29 : vector<32x128xf32>
    %c0_11 = arith.constant 0 : index
    %c0_12 = arith.constant 0 : index
    %31 = vector.load %arg5[%c0_11, %c0_12] : memref<32x128xf32, #tpu.memory_space<vmem>>, vector<32x128xf32>
    %32 = arith.truncf %31 : vector<32x128xf32> to vector<32x128xbf16>
    %cst_13 = arith.constant 0.000000e+00 : f32
    %33 = vector.broadcast %cst_13 : f32 to vector<2x32xf32>
    %cst_14 = arith.constant 0.000000e+00 : f32
    %34 = vector.broadcast %cst_14 : f32 to vector<2x32xf32>
    %35 = vector.extract_strided_slice %30 {offsets = [0, 0], sizes = [2, 128], strides = [1, 1]} : vector<32x128xf32> to vector<2x128xf32>
    %36 = arith.truncf %33 : vector<2x32xf32> to vector<2x32xbf16>
    %cst_15 = arith.constant dense<0.000000e+00> : vector<2x128xf32>
    %37 = tpu.matmul %36, %32, %cst_15 {dimension_numbers = #tpu.dot_dimension_numbers<[1], [0], [0], [1], [0, 0, 1, 1], [], []>} : vector<2x32xbf16>, vector<32x128xbf16>, vector<2x128xf32> -> vector<2x128xf32>
    %38 = arith.addf %35, %37 : vector<2x128xf32>
    %39 = arith.negf %38 : vector<2x128xf32>
    %40 = math.exp %39 : vector<2x128xf32>
    %cst_16 = arith.constant 1.000000e+00 : f32
    %41 = vector.broadcast %cst_16 : f32 to vector<2x128xf32>
    %42 = arith.addf %41, %40 : vector<2x128xf32>
    %43 = arith.divf %41, %42 : vector<2x128xf32>
    %44 = math.tanh %38 : vector<2x128xf32>
    %45 = vector.extract_strided_slice %43 {offsets = [0, 0], sizes = [2, 32], strides = [1, 1]} : vector<2x128xf32> to vector<2x32xf32>
    %46 = vector.extract_strided_slice %43 {offsets = [0, 32], sizes = [2, 32], strides = [1, 1]} : vector<2x128xf32> to vector<2x32xf32>
    %47 = vector.extract_strided_slice %44 {offsets = [0, 64], sizes = [2, 32], strides = [1, 1]} : vector<2x128xf32> to vector<2x32xf32>
    %48 = vector.extract_strided_slice %43 {offsets = [0, 96], sizes = [2, 32], strides = [1, 1]} : vector<2x128xf32> to vector<2x32xf32>
    %49 = arith.mulf %46, %34 : vector<2x32xf32>
    %50 = arith.mulf %45, %47 : vector<2x32xf32>
    %51 = arith.addf %49, %50 : vector<2x32xf32>
    %52 = math.tanh %51 : vector<2x32xf32>
    %53 = arith.mulf %48, %52 : vector<2x32xf32>
    %54 = vector.extract_strided_slice %30 {offsets = [2, 0], sizes = [2, 128], strides = [1, 1]} : vector<32x128xf32> to vector<2x128xf32>
    %55 = arith.truncf %53 : vector<2x32xf32> to vector<2x32xbf16>
    %cst_17 = arith.constant dense<0.000000e+00> : vector<2x128xf32>
    %56 = tpu.matmul %55, %32, %cst_17 {dimension_numbers = #tpu.dot_dimension_numbers<[1], [0], [0], [1], [0, 0, 1, 1], [], []>} : vector<2x32xbf16>, vector<32x128xbf16>, vector<2x128xf32> -> vector<2x128xf32>
    %57 = arith.addf %54, %56 : vector<2x128xf32>
    %58 = arith.negf %57 : vector<2x128xf32>
    %59 = math.exp %58 : vector<2x128xf32>
    %cst_18 = arith.constant 1.000000e+00 : f32
    %60 = vector.broadcast %cst_18 : f32 to vector<2x128xf32>
    %61 = arith.addf %60, %59 : vector<2x128xf32>
    %62 = arith.divf %60, %61 : vector<2x128xf32>
    %63 = math.tanh %57 : vector<2x128xf32>
    %64 = vector.extract_strided_slice %62 {offsets = [0, 0], sizes = [2, 32], strides = [1, 1]} : vector<2x128xf32> to vector<2x32xf32>
    %65 = vector.extract_strided_slice %62 {offsets = [0, 32], sizes = [2, 32], strides = [1, 1]} : vector<2x128xf32> to vector<2x32xf32>
    %66 = vector.extract_strided_slice %63 {offsets = [0, 64], sizes = [2, 32], strides = [1, 1]} : vector<2x128xf32> to vector<2x32xf32>
    %67 = vector.extract_strided_slice %62 {offsets = [0, 96], sizes = [2, 32], strides = [1, 1]} : vector<2x128xf32> to vector<2x32xf32>
    %68 = arith.mulf %65, %51 : vector<2x32xf32>
    %69 = arith.mulf %64, %66 : vector<2x32xf32>
    %70 = arith.addf %68, %69 : vector<2x32xf32>
    %71 = math.tanh %70 : vector<2x32xf32>
    %72 = arith.mulf %67, %71 : vector<2x32xf32>
    %73 = vector.extract_strided_slice %30 {offsets = [4, 0], sizes = [2, 128], strides = [1, 1]} : vector<32x128xf32> to vector<2x128xf32>
    %74 = arith.truncf %72 : vector<2x32xf32> to vector<2x32xbf16>
    %cst_19 = arith.constant dense<0.000000e+00> : vector<2x128xf32>
    %75 = tpu.matmul %74, %32, %cst_19 {dimension_numbers = #tpu.dot_dimension_numbers<[1], [0], [0], [1], [0, 0, 1, 1], [], []>} : vector<2x32xbf16>, vector<32x128xbf16>, vector<2x128xf32> -> vector<2x128xf32>
    %76 = arith.addf %73, %75 : vector<2x128xf32>
    %77 = arith.negf %76 : vector<2x128xf32>
    %78 = math.exp %77 : vector<2x128xf32>
    %cst_20 = arith.constant 1.000000e+00 : f32
    %79 = vector.broadcast %cst_20 : f32 to vector<2x128xf32>
    %80 = arith.addf %79, %78 : vector<2x128xf32>
    %81 = arith.divf %79, %80 : vector<2x128xf32>
    %82 = math.tanh %76 : vector<2x128xf32>
    %83 = vector.extract_strided_slice %81 {offsets = [0, 0], sizes = [2, 32], strides = [1, 1]} : vector<2x128xf32> to vector<2x32xf32>
    %84 = vector.extract_strided_slice %81 {offsets = [0, 32], sizes = [2, 32], strides = [1, 1]} : vector<2x128xf32> to vector<2x32xf32>
    %85 = vector.extract_strided_slice %82 {offsets = [0, 64], sizes = [2, 32], strides = [1, 1]} : vector<2x128xf32> to vector<2x32xf32>
    %86 = vector.extract_strided_slice %81 {offsets = [0, 96], sizes = [2, 32], strides = [1, 1]} : vector<2x128xf32> to vector<2x32xf32>
    %87 = arith.mulf %84, %70 : vector<2x32xf32>
    %88 = arith.mulf %83, %85 : vector<2x32xf32>
    %89 = arith.addf %87, %88 : vector<2x32xf32>
    %90 = math.tanh %89 : vector<2x32xf32>
    %91 = arith.mulf %86, %90 : vector<2x32xf32>
    %92 = vector.extract_strided_slice %30 {offsets = [6, 0], sizes = [2, 128], strides = [1, 1]} : vector<32x128xf32> to vector<2x128xf32>
    %93 = arith.truncf %91 : vector<2x32xf32> to vector<2x32xbf16>
    %cst_21 = arith.constant dense<0.000000e+00> : vector<2x128xf32>
    %94 = tpu.matmul %93, %32, %cst_21 {dimension_numbers = #tpu.dot_dimension_numbers<[1], [0], [0], [1], [0, 0, 1, 1], [], []>} : vector<2x32xbf16>, vector<32x128xbf16>, vector<2x128xf32> -> vector<2x128xf32>
    %95 = arith.addf %92, %94 : vector<2x128xf32>
    %96 = arith.negf %95 : vector<2x128xf32>
    %97 = math.exp %96 : vector<2x128xf32>
    %cst_22 = arith.constant 1.000000e+00 : f32
    %98 = vector.broadcast %cst_22 : f32 to vector<2x128xf32>
    %99 = arith.addf %98, %97 : vector<2x128xf32>
    %100 = arith.divf %98, %99 : vector<2x128xf32>
    %101 = math.tanh %95 : vector<2x128xf32>
    %102 = vector.extract_strided_slice %100 {offsets = [0, 0], sizes = [2, 32], strides = [1, 1]} : vector<2x128xf32> to vector<2x32xf32>
    %103 = vector.extract_strided_slice %100 {offsets = [0, 32], sizes = [2, 32], strides = [1, 1]} : vector<2x128xf32> to vector<2x32xf32>
    %104 = vector.extract_strided_slice %101 {offsets = [0, 64], sizes = [2, 32], strides = [1, 1]} : vector<2x128xf32> to vector<2x32xf32>
    %105 = vector.extract_strided_slice %100 {offsets = [0, 96], sizes = [2, 32], strides = [1, 1]} : vector<2x128xf32> to vector<2x32xf32>
    %106 = arith.mulf %103, %89 : vector<2x32xf32>
    %107 = arith.mulf %102, %104 : vector<2x32xf32>
    %108 = arith.addf %106, %107 : vector<2x32xf32>
    %109 = math.tanh %108 : vector<2x32xf32>
    %110 = arith.mulf %105, %109 : vector<2x32xf32>
    %111 = vector.extract_strided_slice %30 {offsets = [8, 0], sizes = [2, 128], strides = [1, 1]} : vector<32x128xf32> to vector<2x128xf32>
    %112 = arith.truncf %110 : vector<2x32xf32> to vector<2x32xbf16>
    %cst_23 = arith.constant dense<0.000000e+00> : vector<2x128xf32>
    %113 = tpu.matmul %112, %32, %cst_23 {dimension_numbers = #tpu.dot_dimension_numbers<[1], [0], [0], [1], [0, 0, 1, 1], [], []>} : vector<2x32xbf16>, vector<32x128xbf16>, vector<2x128xf32> -> vector<2x128xf32>
    %114 = arith.addf %111, %113 : vector<2x128xf32>
    %115 = arith.negf %114 : vector<2x128xf32>
    %116 = math.exp %115 : vector<2x128xf32>
    %cst_24 = arith.constant 1.000000e+00 : f32
    %117 = vector.broadcast %cst_24 : f32 to vector<2x128xf32>
    %118 = arith.addf %117, %116 : vector<2x128xf32>
    %119 = arith.divf %117, %118 : vector<2x128xf32>
    %120 = math.tanh %114 : vector<2x128xf32>
    %121 = vector.extract_strided_slice %119 {offsets = [0, 0], sizes = [2, 32], strides = [1, 1]} : vector<2x128xf32> to vector<2x32xf32>
    %122 = vector.extract_strided_slice %119 {offsets = [0, 32], sizes = [2, 32], strides = [1, 1]} : vector<2x128xf32> to vector<2x32xf32>
    %123 = vector.extract_strided_slice %120 {offsets = [0, 64], sizes = [2, 32], strides = [1, 1]} : vector<2x128xf32> to vector<2x32xf32>
    %124 = vector.extract_strided_slice %119 {offsets = [0, 96], sizes = [2, 32], strides = [1, 1]} : vector<2x128xf32> to vector<2x32xf32>
    %125 = arith.mulf %122, %108 : vector<2x32xf32>
    %126 = arith.mulf %121, %123 : vector<2x32xf32>
    %127 = arith.addf %125, %126 : vector<2x32xf32>
    %128 = math.tanh %127 : vector<2x32xf32>
    %129 = arith.mulf %124, %128 : vector<2x32xf32>
    %130 = vector.extract_strided_slice %30 {offsets = [10, 0], sizes = [2, 128], strides = [1, 1]} : vector<32x128xf32> to vector<2x128xf32>
    %131 = arith.truncf %129 : vector<2x32xf32> to vector<2x32xbf16>
    %cst_25 = arith.constant dense<0.000000e+00> : vector<2x128xf32>
    %132 = tpu.matmul %131, %32, %cst_25 {dimension_numbers = #tpu.dot_dimension_numbers<[1], [0], [0], [1], [0, 0, 1, 1], [], []>} : vector<2x32xbf16>, vector<32x128xbf16>, vector<2x128xf32> -> vector<2x128xf32>
    %133 = arith.addf %130, %132 : vector<2x128xf32>
    %134 = arith.negf %133 : vector<2x128xf32>
    %135 = math.exp %134 : vector<2x128xf32>
    %cst_26 = arith.constant 1.000000e+00 : f32
    %136 = vector.broadcast %cst_26 : f32 to vector<2x128xf32>
    %137 = arith.addf %136, %135 : vector<2x128xf32>
    %138 = arith.divf %136, %137 : vector<2x128xf32>
    %139 = math.tanh %133 : vector<2x128xf32>
    %140 = vector.extract_strided_slice %138 {offsets = [0, 0], sizes = [2, 32], strides = [1, 1]} : vector<2x128xf32> to vector<2x32xf32>
    %141 = vector.extract_strided_slice %138 {offsets = [0, 32], sizes = [2, 32], strides = [1, 1]} : vector<2x128xf32> to vector<2x32xf32>
    %142 = vector.extract_strided_slice %139 {offsets = [0, 64], sizes = [2, 32], strides = [1, 1]} : vector<2x128xf32> to vector<2x32xf32>
    %143 = vector.extract_strided_slice %138 {offsets = [0, 96], sizes = [2, 32], strides = [1, 1]} : vector<2x128xf32> to vector<2x32xf32>
    %144 = arith.mulf %141, %127 : vector<2x32xf32>
    %145 = arith.mulf %140, %142 : vector<2x32xf32>
    %146 = arith.addf %144, %145 : vector<2x32xf32>
    %147 = math.tanh %146 : vector<2x32xf32>
    %148 = arith.mulf %143, %147 : vector<2x32xf32>
    %149 = vector.extract_strided_slice %30 {offsets = [12, 0], sizes = [2, 128], strides = [1, 1]} : vector<32x128xf32> to vector<2x128xf32>
    %150 = arith.truncf %148 : vector<2x32xf32> to vector<2x32xbf16>
    %cst_27 = arith.constant dense<0.000000e+00> : vector<2x128xf32>
    %151 = tpu.matmul %150, %32, %cst_27 {dimension_numbers = #tpu.dot_dimension_numbers<[1], [0], [0], [1], [0, 0, 1, 1], [], []>} : vector<2x32xbf16>, vector<32x128xbf16>, vector<2x128xf32> -> vector<2x128xf32>
    %152 = arith.addf %149, %151 : vector<2x128xf32>
    %153 = arith.negf %152 : vector<2x128xf32>
    %154 = math.exp %153 : vector<2x128xf32>
    %cst_28 = arith.constant 1.000000e+00 : f32
    %155 = vector.broadcast %cst_28 : f32 to vector<2x128xf32>
    %156 = arith.addf %155, %154 : vector<2x128xf32>
    %157 = arith.divf %155, %156 : vector<2x128xf32>
    %158 = math.tanh %152 : vector<2x128xf32>
    %159 = vector.extract_strided_slice %157 {offsets = [0, 0], sizes = [2, 32], strides = [1, 1]} : vector<2x128xf32> to vector<2x32xf32>
    %160 = vector.extract_strided_slice %157 {offsets = [0, 32], sizes = [2, 32], strides = [1, 1]} : vector<2x128xf32> to vector<2x32xf32>
    %161 = vector.extract_strided_slice %158 {offsets = [0, 64], sizes = [2, 32], strides = [1, 1]} : vector<2x128xf32> to vector<2x32xf32>
    %162 = vector.extract_strided_slice %157 {offsets = [0, 96], sizes = [2, 32], strides = [1, 1]} : vector<2x128xf32> to vector<2x32xf32>
    %163 = arith.mulf %160, %146 : vector<2x32xf32>
    %164 = arith.mulf %159, %161 : vector<2x32xf32>
    %165 = arith.addf %163, %164 : vector<2x32xf32>
    %166 = math.tanh %165 : vector<2x32xf32>
    %167 = arith.mulf %162, %166 : vector<2x32xf32>
    %168 = vector.extract_strided_slice %30 {offsets = [14, 0], sizes = [2, 128], strides = [1, 1]} : vector<32x128xf32> to vector<2x128xf32>
    %169 = arith.truncf %167 : vector<2x32xf32> to vector<2x32xbf16>
    %cst_29 = arith.constant dense<0.000000e+00> : vector<2x128xf32>
    %170 = tpu.matmul %169, %32, %cst_29 {dimension_numbers = #tpu.dot_dimension_numbers<[1], [0], [0], [1], [0, 0, 1, 1], [], []>} : vector<2x32xbf16>, vector<32x128xbf16>, vector<2x128xf32> -> vector<2x128xf32>
    %171 = arith.addf %168, %170 : vector<2x128xf32>
    %172 = arith.negf %171 : vector<2x128xf32>
    %173 = math.exp %172 : vector<2x128xf32>
    %cst_30 = arith.constant 1.000000e+00 : f32
    %174 = vector.broadcast %cst_30 : f32 to vector<2x128xf32>
    %175 = arith.addf %174, %173 : vector<2x128xf32>
    %176 = arith.divf %174, %175 : vector<2x128xf32>
    %177 = math.tanh %171 : vector<2x128xf32>
    %178 = vector.extract_strided_slice %176 {offsets = [0, 0], sizes = [2, 32], strides = [1, 1]} : vector<2x128xf32> to vector<2x32xf32>
    %179 = vector.extract_strided_slice %176 {offsets = [0, 32], sizes = [2, 32], strides = [1, 1]} : vector<2x128xf32> to vector<2x32xf32>
    %180 = vector.extract_strided_slice %177 {offsets = [0, 64], sizes = [2, 32], strides = [1, 1]} : vector<2x128xf32> to vector<2x32xf32>
    %181 = vector.extract_strided_slice %176 {offsets = [0, 96], sizes = [2, 32], strides = [1, 1]} : vector<2x128xf32> to vector<2x32xf32>
    %182 = arith.mulf %179, %165 : vector<2x32xf32>
    %183 = arith.mulf %178, %180 : vector<2x32xf32>
    %184 = arith.addf %182, %183 : vector<2x32xf32>
    %185 = math.tanh %184 : vector<2x32xf32>
    %186 = arith.mulf %181, %185 : vector<2x32xf32>
    %187 = vector.extract_strided_slice %30 {offsets = [16, 0], sizes = [2, 128], strides = [1, 1]} : vector<32x128xf32> to vector<2x128xf32>
    %188 = arith.truncf %186 : vector<2x32xf32> to vector<2x32xbf16>
    %cst_31 = arith.constant dense<0.000000e+00> : vector<2x128xf32>
    %189 = tpu.matmul %188, %32, %cst_31 {dimension_numbers = #tpu.dot_dimension_numbers<[1], [0], [0], [1], [0, 0, 1, 1], [], []>} : vector<2x32xbf16>, vector<32x128xbf16>, vector<2x128xf32> -> vector<2x128xf32>
    %190 = arith.addf %187, %189 : vector<2x128xf32>
    %191 = arith.negf %190 : vector<2x128xf32>
    %192 = math.exp %191 : vector<2x128xf32>
    %cst_32 = arith.constant 1.000000e+00 : f32
    %193 = vector.broadcast %cst_32 : f32 to vector<2x128xf32>
    %194 = arith.addf %193, %192 : vector<2x128xf32>
    %195 = arith.divf %193, %194 : vector<2x128xf32>
    %196 = math.tanh %190 : vector<2x128xf32>
    %197 = vector.extract_strided_slice %195 {offsets = [0, 0], sizes = [2, 32], strides = [1, 1]} : vector<2x128xf32> to vector<2x32xf32>
    %198 = vector.extract_strided_slice %195 {offsets = [0, 32], sizes = [2, 32], strides = [1, 1]} : vector<2x128xf32> to vector<2x32xf32>
    %199 = vector.extract_strided_slice %196 {offsets = [0, 64], sizes = [2, 32], strides = [1, 1]} : vector<2x128xf32> to vector<2x32xf32>
    %200 = vector.extract_strided_slice %195 {offsets = [0, 96], sizes = [2, 32], strides = [1, 1]} : vector<2x128xf32> to vector<2x32xf32>
    %201 = arith.mulf %198, %184 : vector<2x32xf32>
    %202 = arith.mulf %197, %199 : vector<2x32xf32>
    %203 = arith.addf %201, %202 : vector<2x32xf32>
    %204 = math.tanh %203 : vector<2x32xf32>
    %205 = arith.mulf %200, %204 : vector<2x32xf32>
    %206 = vector.extract_strided_slice %30 {offsets = [18, 0], sizes = [2, 128], strides = [1, 1]} : vector<32x128xf32> to vector<2x128xf32>
    %207 = arith.truncf %205 : vector<2x32xf32> to vector<2x32xbf16>
    %cst_33 = arith.constant dense<0.000000e+00> : vector<2x128xf32>
    %208 = tpu.matmul %207, %32, %cst_33 {dimension_numbers = #tpu.dot_dimension_numbers<[1], [0], [0], [1], [0, 0, 1, 1], [], []>} : vector<2x32xbf16>, vector<32x128xbf16>, vector<2x128xf32> -> vector<2x128xf32>
    %209 = arith.addf %206, %208 : vector<2x128xf32>
    %210 = arith.negf %209 : vector<2x128xf32>
    %211 = math.exp %210 : vector<2x128xf32>
    %cst_34 = arith.constant 1.000000e+00 : f32
    %212 = vector.broadcast %cst_34 : f32 to vector<2x128xf32>
    %213 = arith.addf %212, %211 : vector<2x128xf32>
    %214 = arith.divf %212, %213 : vector<2x128xf32>
    %215 = math.tanh %209 : vector<2x128xf32>
    %216 = vector.extract_strided_slice %214 {offsets = [0, 0], sizes = [2, 32], strides = [1, 1]} : vector<2x128xf32> to vector<2x32xf32>
    %217 = vector.extract_strided_slice %214 {offsets = [0, 32], sizes = [2, 32], strides = [1, 1]} : vector<2x128xf32> to vector<2x32xf32>
    %218 = vector.extract_strided_slice %215 {offsets = [0, 64], sizes = [2, 32], strides = [1, 1]} : vector<2x128xf32> to vector<2x32xf32>
    %219 = vector.extract_strided_slice %214 {offsets = [0, 96], sizes = [2, 32], strides = [1, 1]} : vector<2x128xf32> to vector<2x32xf32>
    %220 = arith.mulf %217, %203 : vector<2x32xf32>
    %221 = arith.mulf %216, %218 : vector<2x32xf32>
    %222 = arith.addf %220, %221 : vector<2x32xf32>
    %223 = math.tanh %222 : vector<2x32xf32>
    %224 = arith.mulf %219, %223 : vector<2x32xf32>
    %225 = vector.extract_strided_slice %30 {offsets = [20, 0], sizes = [2, 128], strides = [1, 1]} : vector<32x128xf32> to vector<2x128xf32>
    %226 = arith.truncf %224 : vector<2x32xf32> to vector<2x32xbf16>
    %cst_35 = arith.constant dense<0.000000e+00> : vector<2x128xf32>
    %227 = tpu.matmul %226, %32, %cst_35 {dimension_numbers = #tpu.dot_dimension_numbers<[1], [0], [0], [1], [0, 0, 1, 1], [], []>} : vector<2x32xbf16>, vector<32x128xbf16>, vector<2x128xf32> -> vector<2x128xf32>
    %228 = arith.addf %225, %227 : vector<2x128xf32>
    %229 = arith.negf %228 : vector<2x128xf32>
    %230 = math.exp %229 : vector<2x128xf32>
    %cst_36 = arith.constant 1.000000e+00 : f32
    %231 = vector.broadcast %cst_36 : f32 to vector<2x128xf32>
    %232 = arith.addf %231, %230 : vector<2x128xf32>
    %233 = arith.divf %231, %232 : vector<2x128xf32>
    %234 = math.tanh %228 : vector<2x128xf32>
    %235 = vector.extract_strided_slice %233 {offsets = [0, 0], sizes = [2, 32], strides = [1, 1]} : vector<2x128xf32> to vector<2x32xf32>
    %236 = vector.extract_strided_slice %233 {offsets = [0, 32], sizes = [2, 32], strides = [1, 1]} : vector<2x128xf32> to vector<2x32xf32>
    %237 = vector.extract_strided_slice %234 {offsets = [0, 64], sizes = [2, 32], strides = [1, 1]} : vector<2x128xf32> to vector<2x32xf32>
    %238 = vector.extract_strided_slice %233 {offsets = [0, 96], sizes = [2, 32], strides = [1, 1]} : vector<2x128xf32> to vector<2x32xf32>
    %239 = arith.mulf %236, %222 : vector<2x32xf32>
    %240 = arith.mulf %235, %237 : vector<2x32xf32>
    %241 = arith.addf %239, %240 : vector<2x32xf32>
    %242 = math.tanh %241 : vector<2x32xf32>
    %243 = arith.mulf %238, %242 : vector<2x32xf32>
    %244 = vector.extract_strided_slice %30 {offsets = [22, 0], sizes = [2, 128], strides = [1, 1]} : vector<32x128xf32> to vector<2x128xf32>
    %245 = arith.truncf %243 : vector<2x32xf32> to vector<2x32xbf16>
    %cst_37 = arith.constant dense<0.000000e+00> : vector<2x128xf32>
    %246 = tpu.matmul %245, %32, %cst_37 {dimension_numbers = #tpu.dot_dimension_numbers<[1], [0], [0], [1], [0, 0, 1, 1], [], []>} : vector<2x32xbf16>, vector<32x128xbf16>, vector<2x128xf32> -> vector<2x128xf32>
    %247 = arith.addf %244, %246 : vector<2x128xf32>
    %248 = arith.negf %247 : vector<2x128xf32>
    %249 = math.exp %248 : vector<2x128xf32>
    %cst_38 = arith.constant 1.000000e+00 : f32
    %250 = vector.broadcast %cst_38 : f32 to vector<2x128xf32>
    %251 = arith.addf %250, %249 : vector<2x128xf32>
    %252 = arith.divf %250, %251 : vector<2x128xf32>
    %253 = math.tanh %247 : vector<2x128xf32>
    %254 = vector.extract_strided_slice %252 {offsets = [0, 0], sizes = [2, 32], strides = [1, 1]} : vector<2x128xf32> to vector<2x32xf32>
    %255 = vector.extract_strided_slice %252 {offsets = [0, 32], sizes = [2, 32], strides = [1, 1]} : vector<2x128xf32> to vector<2x32xf32>
    %256 = vector.extract_strided_slice %253 {offsets = [0, 64], sizes = [2, 32], strides = [1, 1]} : vector<2x128xf32> to vector<2x32xf32>
    %257 = vector.extract_strided_slice %252 {offsets = [0, 96], sizes = [2, 32], strides = [1, 1]} : vector<2x128xf32> to vector<2x32xf32>
    %258 = arith.mulf %255, %241 : vector<2x32xf32>
    %259 = arith.mulf %254, %256 : vector<2x32xf32>
    %260 = arith.addf %258, %259 : vector<2x32xf32>
    %261 = math.tanh %260 : vector<2x32xf32>
    %262 = arith.mulf %257, %261 : vector<2x32xf32>
    %263 = vector.extract_strided_slice %30 {offsets = [24, 0], sizes = [2, 128], strides = [1, 1]} : vector<32x128xf32> to vector<2x128xf32>
    %264 = arith.truncf %262 : vector<2x32xf32> to vector<2x32xbf16>
    %cst_39 = arith.constant dense<0.000000e+00> : vector<2x128xf32>
    %265 = tpu.matmul %264, %32, %cst_39 {dimension_numbers = #tpu.dot_dimension_numbers<[1], [0], [0], [1], [0, 0, 1, 1], [], []>} : vector<2x32xbf16>, vector<32x128xbf16>, vector<2x128xf32> -> vector<2x128xf32>
    %266 = arith.addf %263, %265 : vector<2x128xf32>
    %267 = arith.negf %266 : vector<2x128xf32>
    %268 = math.exp %267 : vector<2x128xf32>
    %cst_40 = arith.constant 1.000000e+00 : f32
    %269 = vector.broadcast %cst_40 : f32 to vector<2x128xf32>
    %270 = arith.addf %269, %268 : vector<2x128xf32>
    %271 = arith.divf %269, %270 : vector<2x128xf32>
    %272 = math.tanh %266 : vector<2x128xf32>
    %273 = vector.extract_strided_slice %271 {offsets = [0, 0], sizes = [2, 32], strides = [1, 1]} : vector<2x128xf32> to vector<2x32xf32>
    %274 = vector.extract_strided_slice %271 {offsets = [0, 32], sizes = [2, 32], strides = [1, 1]} : vector<2x128xf32> to vector<2x32xf32>
    %275 = vector.extract_strided_slice %272 {offsets = [0, 64], sizes = [2, 32], strides = [1, 1]} : vector<2x128xf32> to vector<2x32xf32>
    %276 = vector.extract_strided_slice %271 {offsets = [0, 96], sizes = [2, 32], strides = [1, 1]} : vector<2x128xf32> to vector<2x32xf32>
    %277 = arith.mulf %274, %260 : vector<2x32xf32>
    %278 = arith.mulf %273, %275 : vector<2x32xf32>
    %279 = arith.addf %277, %278 : vector<2x32xf32>
    %280 = math.tanh %279 : vector<2x32xf32>
    %281 = arith.mulf %276, %280 : vector<2x32xf32>
    %282 = vector.extract_strided_slice %30 {offsets = [26, 0], sizes = [2, 128], strides = [1, 1]} : vector<32x128xf32> to vector<2x128xf32>
    %283 = arith.truncf %281 : vector<2x32xf32> to vector<2x32xbf16>
    %cst_41 = arith.constant dense<0.000000e+00> : vector<2x128xf32>
    %284 = tpu.matmul %283, %32, %cst_41 {dimension_numbers = #tpu.dot_dimension_numbers<[1], [0], [0], [1], [0, 0, 1, 1], [], []>} : vector<2x32xbf16>, vector<32x128xbf16>, vector<2x128xf32> -> vector<2x128xf32>
    %285 = arith.addf %282, %284 : vector<2x128xf32>
    %286 = arith.negf %285 : vector<2x128xf32>
    %287 = math.exp %286 : vector<2x128xf32>
    %cst_42 = arith.constant 1.000000e+00 : f32
    %288 = vector.broadcast %cst_42 : f32 to vector<2x128xf32>
    %289 = arith.addf %288, %287 : vector<2x128xf32>
    %290 = arith.divf %288, %289 : vector<2x128xf32>
    %291 = math.tanh %285 : vector<2x128xf32>
    %292 = vector.extract_strided_slice %290 {offsets = [0, 0], sizes = [2, 32], strides = [1, 1]} : vector<2x128xf32> to vector<2x32xf32>
    %293 = vector.extract_strided_slice %290 {offsets = [0, 32], sizes = [2, 32], strides = [1, 1]} : vector<2x128xf32> to vector<2x32xf32>
    %294 = vector.extract_strided_slice %291 {offsets = [0, 64], sizes = [2, 32], strides = [1, 1]} : vector<2x128xf32> to vector<2x32xf32>
    %295 = vector.extract_strided_slice %290 {offsets = [0, 96], sizes = [2, 32], strides = [1, 1]} : vector<2x128xf32> to vector<2x32xf32>
    %296 = arith.mulf %293, %279 : vector<2x32xf32>
    %297 = arith.mulf %292, %294 : vector<2x32xf32>
    %298 = arith.addf %296, %297 : vector<2x32xf32>
    %299 = math.tanh %298 : vector<2x32xf32>
    %300 = arith.mulf %295, %299 : vector<2x32xf32>
    %301 = vector.extract_strided_slice %30 {offsets = [28, 0], sizes = [2, 128], strides = [1, 1]} : vector<32x128xf32> to vector<2x128xf32>
    %302 = arith.truncf %300 : vector<2x32xf32> to vector<2x32xbf16>
    %cst_43 = arith.constant dense<0.000000e+00> : vector<2x128xf32>
    %303 = tpu.matmul %302, %32, %cst_43 {dimension_numbers = #tpu.dot_dimension_numbers<[1], [0], [0], [1], [0, 0, 1, 1], [], []>} : vector<2x32xbf16>, vector<32x128xbf16>, vector<2x128xf32> -> vector<2x128xf32>
    %304 = arith.addf %301, %303 : vector<2x128xf32>
    %305 = arith.negf %304 : vector<2x128xf32>
    %306 = math.exp %305 : vector<2x128xf32>
    %cst_44 = arith.constant 1.000000e+00 : f32
    %307 = vector.broadcast %cst_44 : f32 to vector<2x128xf32>
    %308 = arith.addf %307, %306 : vector<2x128xf32>
    %309 = arith.divf %307, %308 : vector<2x128xf32>
    %310 = math.tanh %304 : vector<2x128xf32>
    %311 = vector.extract_strided_slice %309 {offsets = [0, 0], sizes = [2, 32], strides = [1, 1]} : vector<2x128xf32> to vector<2x32xf32>
    %312 = vector.extract_strided_slice %309 {offsets = [0, 32], sizes = [2, 32], strides = [1, 1]} : vector<2x128xf32> to vector<2x32xf32>
    %313 = vector.extract_strided_slice %310 {offsets = [0, 64], sizes = [2, 32], strides = [1, 1]} : vector<2x128xf32> to vector<2x32xf32>
    %314 = vector.extract_strided_slice %309 {offsets = [0, 96], sizes = [2, 32], strides = [1, 1]} : vector<2x128xf32> to vector<2x32xf32>
    %315 = arith.mulf %312, %298 : vector<2x32xf32>
    %316 = arith.mulf %311, %313 : vector<2x32xf32>
    %317 = arith.addf %315, %316 : vector<2x32xf32>
    %318 = math.tanh %317 : vector<2x32xf32>
    %319 = arith.mulf %314, %318 : vector<2x32xf32>
    %320 = vector.extract_strided_slice %30 {offsets = [30, 0], sizes = [2, 128], strides = [1, 1]} : vector<32x128xf32> to vector<2x128xf32>
    %321 = arith.truncf %319 : vector<2x32xf32> to vector<2x32xbf16>
    %cst_45 = arith.constant dense<0.000000e+00> : vector<2x128xf32>
    %322 = tpu.matmul %321, %32, %cst_45 {dimension_numbers = #tpu.dot_dimension_numbers<[1], [0], [0], [1], [0, 0, 1, 1], [], []>} : vector<2x32xbf16>, vector<32x128xbf16>, vector<2x128xf32> -> vector<2x128xf32>
    %323 = arith.addf %320, %322 : vector<2x128xf32>
    %324 = arith.negf %323 : vector<2x128xf32>
    %325 = math.exp %324 : vector<2x128xf32>
    %cst_46 = arith.constant 1.000000e+00 : f32
    %326 = vector.broadcast %cst_46 : f32 to vector<2x128xf32>
    %327 = arith.addf %326, %325 : vector<2x128xf32>
    %328 = arith.divf %326, %327 : vector<2x128xf32>
    %329 = math.tanh %323 : vector<2x128xf32>
    %330 = vector.extract_strided_slice %328 {offsets = [0, 0], sizes = [2, 32], strides = [1, 1]} : vector<2x128xf32> to vector<2x32xf32>
    %331 = vector.extract_strided_slice %328 {offsets = [0, 32], sizes = [2, 32], strides = [1, 1]} : vector<2x128xf32> to vector<2x32xf32>
    %332 = vector.extract_strided_slice %329 {offsets = [0, 64], sizes = [2, 32], strides = [1, 1]} : vector<2x128xf32> to vector<2x32xf32>
    %333 = vector.extract_strided_slice %328 {offsets = [0, 96], sizes = [2, 32], strides = [1, 1]} : vector<2x128xf32> to vector<2x32xf32>
    %334 = arith.mulf %331, %317 : vector<2x32xf32>
    %335 = arith.mulf %330, %332 : vector<2x32xf32>
    %336 = arith.addf %334, %335 : vector<2x32xf32>
    %337 = math.tanh %336 : vector<2x32xf32>
    %338 = arith.mulf %333, %337 : vector<2x32xf32>
    %339 = tpu.concatenate %53, %72, %91, %110, %129, %148, %167, %186, %205, %224, %243, %262, %281, %300, %319, %338 in 0 : vector<2x32xf32>, vector<2x32xf32>, vector<2x32xf32>, vector<2x32xf32>, vector<2x32xf32>, vector<2x32xf32>, vector<2x32xf32>, vector<2x32xf32>, vector<2x32xf32>, vector<2x32xf32>, vector<2x32xf32>, vector<2x32xf32>, vector<2x32xf32>, vector<2x32xf32>, vector<2x32xf32>, vector<2x32xf32> -> vector<32x32xf32>
    %340 = arith.addf %5, %339 : vector<32x32xf32>
    %c0_47 = arith.constant 0 : index
    %c0_48 = arith.constant 0 : index
    %341 = vector.load %arg6[%c0_47, %c0_48] : memref<32x32xf32, #tpu.memory_space<vmem>>, vector<32x32xf32>
    tpu.vector_store %arg6[%c0_47, %c0_48], %340 {strides = array<i32>} : memref<32x32xf32, #tpu.memory_space<vmem>>, vector<32x32xf32>,
    return
  }
}

</mosaic_0001>

<llo_original>
// kernel: resdual_block.1
$region0: #{resdual_block.1}
  #allocation0 [shape = 'u32[]', space=smem, size = 0x4, offset = 0x4, fixed_abs, tag = 'smem constant byte address 0x4 - core index']
  #allocation1 [shape = 'u32[144,128]{1,0:T(1,128)}', space=vmem, size = 0x12000, scoped, tag = 'internal scratch']
  %s0 = inlined_call_operand.vmem [shape: f32[36,32], index: 0, kind: input, shape index: {}]
  %s1 = inlined_call_operand.vmem [shape: f32[160,32], index: 1, kind: input, shape index: {}]
  %s2 = inlined_call_operand.vmem [shape: f32[1,32], index: 2, kind: input, shape index: {}]
  %s3 = inlined_call_operand.vmem [shape: f32[160,128], index: 3, kind: input, shape index: {}]
  %s4 = inlined_call_operand.vmem [shape: f32[1,128], index: 4, kind: input, shape index: {}]
  %s5 = inlined_call_operand.vmem [shape: f32[32,128], index: 5, kind: input, shape index: {}]
  %s6 = inlined_call_operand.vmem [shape: f32[32,32], index: 6, kind: output, shape index: {}]
  %s7 = sld [smem:[#allocation0]]
  $region34: #{resdual_block.1} parent=0
    _
  %s9 = ssub.s32 1, %s7
  %s10 = scalar_select 0, %s9, %s7
  // Predicated region
  $region2: #{resdual_block.1} parent=0 // pred_check
    _
  $region3: #{resdual_block.1} parent=0 // pred_check_branch
    %12 = sbr.rel (0) target = $region5
  $region4: #{resdual_block.1} parent=0 // pred_region
    _
  $region5: #{resdual_block.1} parent=0 // pred_fallthru
    _
  // Predicated region
  $region6: #{resdual_block.1} parent=0 // pred_check
    _
  $region7: #{resdual_block.1} parent=0 // pred_check_branch
    %14 = sbr.rel (0) target = $region9
  $region8: #{resdual_block.1} parent=0 // pred_region
    _
  $region9: #{resdual_block.1} parent=0 // pred_fallthru
    _
  // Predicated region
  $region10: #{resdual_block.1} parent=0 // pred_check
    _
  $region11: #{resdual_block.1} parent=0 // pred_check_branch
    %16 = sbr.rel (0) target = $region13
  $region12: #{resdual_block.1} parent=0 // pred_region
    _
  $region13: #{resdual_block.1} parent=0 // pred_fallthru
    _
  // Predicated region
  $region14: #{resdual_block.1} parent=0 // pred_check
    _
  $region15: #{resdual_block.1} parent=0 // pred_check_branch
    %18 = sbr.rel (0) target = $region17
  $region16: #{resdual_block.1} parent=0 // pred_region
    _
  $region17: #{resdual_block.1} parent=0 // pred_fallthru
    _
  // Predicated region
  $region18: #{resdual_block.1} parent=0 // pred_check
    _
  $region19: #{resdual_block.1} parent=0 // pred_check_branch
    %20 = sbr.rel (0) target = $region21
  $region20: #{resdual_block.1} parent=0 // pred_region
    _
  $region21: #{resdual_block.1} parent=0 // pred_fallthru
    _
  // Predicated region
  $region22: #{resdual_block.1} parent=0 // pred_check
    _
  $region23: #{resdual_block.1} parent=0 // pred_check_branch
    %22 = sbr.rel (0) target = $region25
  $region24: #{resdual_block.1} parent=0 // pred_region
    _
  $region25: #{resdual_block.1} parent=0 // pred_fallthru
    _
  %v24 = vld [vmem:[%s0] sm:$0xff]
  %v25 = vld [vmem:[%s0 + $0x8] sm:$0xff]
  %v26 = vld [vmem:[%s0 + $0x10] sm:$0xff]
  %v27 = vld [vmem:[%s0 + $0x18] sm:$0xff]
  %v28 = vld [vmem:[%s0 + $0x20] sm:$0xf]
  %vm34 = vcmask 1045504
  %v35 = vrot.slane %v24, 2
  %v36 = vrot.slane %v25, 2
  %v37 = vsel %vm34, %v35, %v36
  %v38 = vrot.slane %v26, 2
  %v39 = vsel %vm34, %v36, %v38
  %v40 = vrot.slane %v27, 2
  %v41 = vsel %vm34, %v38, %v40
  %v42 = vrot.slane %v28, 2
  %v43 = vsel %vm34, %v40, %v42
  %v48 = vmax.f32 %v24, %v37
  %v49 = vmax.f32 %v25, %v39
  %v50 = vmax.f32 %v26, %v41
  %v51 = vmax.f32 %v27, %v43
  %vm52 = vcmask 1043456
  %v53 = vrot.slane %v24, 4
  %v54 = vrot.slane %v25, 4
  %v55 = vsel %vm52, %v53, %v54
  %v56 = vrot.slane %v26, 4
  %v57 = vsel %vm52, %v54, %v56
  %v58 = vrot.slane %v27, 4
  %v59 = vsel %vm52, %v56, %v58
  %v60 = vrot.slane %v28, 4
  %v61 = vsel %vm52, %v58, %v60
  %v66 = vmax.f32 %v48, %v55
  %v67 = vmax.f32 %v49, %v57
  %v68 = vmax.f32 %v50, %v59
  %v69 = vmax.f32 %v51, %v61
  %v74 = vrot.slane %v66, 4
  %v75 = vrot.slane %v67, 4
  %v76 = vsel %vm52, %v74, %v75
  %v77 = vrot.slane %v68, 4
  %v78 = vsel %vm52, %v75, %v77
  %v79 = vrot.slane %v69, 4
  %v80 = vsel %vm52, %v77, %v79
  %v86 = vsel %vm52, 0.0, %v74
  %v87 = vsel %vm52, %v79, 0.0
  %v90 = vrot.slane %v86, 2
  %v91 = vrot.slane %v76, 2
  %v92 = vsel %vm34, %v90, %v91
  %v93 = vrot.slane %v78, 2
  %v94 = vsel %vm34, %v91, %v93
  %v95 = vrot.slane %v80, 2
  %v96 = vsel %vm34, %v93, %v95
  %v97 = vrot.slane %v87, 2
  %v98 = vsel %vm34, %v95, %v97
  %99 = vrot.lane.b32.xlu0 %v92, 32
  %v100 = vpop.permute.xlu0 %99
  %101 = vrot.lane.b32.xlu0 %v94, 32
  %v102 = vpop.permute.xlu0 %101
  %103 = vrot.lane.b32.xlu0 %v96, 32
  %v104 = vpop.permute.xlu0 %103
  %105 = vrot.lane.b32.xlu0 %v98, 32
  %v106 = vpop.permute.xlu0 %105
  %v111 = vrot.slane %v86, 4
  %v112 = vrot.slane %v76, 4
  %v113 = vsel %vm52, %v111, %v112
  %v114 = vrot.slane %v78, 4
  %v115 = vsel %vm52, %v112, %v114
  %v116 = vrot.slane %v80, 4
  %v117 = vsel %vm52, %v114, %v116
  %v118 = vrot.slane %v87, 4
  %v119 = vsel %vm52, %v116, %v118
  %120 = vrot.lane.b32.xlu0 %v113, 64
  %v121 = vpop.permute.xlu0 %120
  %122 = vrot.lane.b32.xlu0 %v115, 64
  %v123 = vpop.permute.xlu0 %122
  %124 = vrot.lane.b32.xlu0 %v117, 64
  %v125 = vpop.permute.xlu0 %124
  %126 = vrot.lane.b32.xlu0 %v119, 64
  %v127 = vpop.permute.xlu0 %126
  %vm132 = vcmask 1041408
  %v133 = vrot.slane %v86, 6
  %v134 = vrot.slane %v76, 6
  %v135 = vsel %vm132, %v133, %v134
  %v136 = vrot.slane %v78, 6
  %v137 = vsel %vm132, %v134, %v136
  %v138 = vrot.slane %v80, 6
  %v139 = vsel %vm132, %v136, %v138
  %v140 = vrot.slane %v87, 6
  %v141 = vsel %vm132, %v138, %v140
  %142 = vrot.lane.b32.xlu0 %v135, 96
  %v143 = vpop.permute.xlu0 %142
  %144 = vrot.lane.b32.xlu0 %v137, 96
  %v145 = vpop.permute.xlu0 %144
  %146 = vrot.lane.b32.xlu0 %v139, 96
  %v147 = vpop.permute.xlu0 %146
  %148 = vrot.lane.b32.xlu0 %v141, 96
  %v149 = vpop.permute.xlu0 %148
  %vm154 = vcmask 261120
  %v155 = vsel %vm154, %v86, %v100
  %v156 = vsel %vm154, %v76, %v102
  %v157 = vsel %vm154, %v78, %v104
  %v158 = vsel %vm154, %v80, %v106
  %vm159 = vcmask 523264
  %v160 = vsel %vm159, %v155, %v121
  %v161 = vsel %vm159, %v156, %v123
  %v162 = vsel %vm159, %v157, %v125
  %v163 = vsel %vm159, %v158, %v127
  %vm164 = vcmask 785408
  %v165 = vsel %vm164, %v160, %v143
  %v166 = vsel %vm164, %v161, %v145
  %v167 = vsel %vm164, %v162, %v147
  %v168 = vsel %vm164, %v163, %v149
  %v169 = vld [vmem:[%s1] sm:$0xff]
  %v170 = vld [vmem:[%s1 + $0x8] sm:$0xff]
  %v171 = vld [vmem:[%s1 + $0x10] sm:$0xff]
  %v172 = vld [vmem:[%s1 + $0x18] sm:$0xff]
  %v173 = vld [vmem:[%s1 + $0x20] sm:$0xff]
  %v174 = vld [vmem:[%s1 + $0x28] sm:$0xff]
  %v175 = vld [vmem:[%s1 + $0x30] sm:$0xff]
  %v176 = vld [vmem:[%s1 + $0x38] sm:$0xff]
  %v177 = vld [vmem:[%s1 + $0x40] sm:$0xff]
  %v178 = vld [vmem:[%s1 + $0x48] sm:$0xff]
  %v179 = vld [vmem:[%s1 + $0x50] sm:$0xff]
  %v180 = vld [vmem:[%s1 + $0x58] sm:$0xff]
  %v181 = vld [vmem:[%s1 + $0x60] sm:$0xff]
  %v182 = vld [vmem:[%s1 + $0x68] sm:$0xff]
  %v183 = vld [vmem:[%s1 + $0x70] sm:$0xff]
  %v184 = vld [vmem:[%s1 + $0x78] sm:$0xff]
  %v185 = vld [vmem:[%s1 + $0x80] sm:$0xff]
  %v186 = vld [vmem:[%s1 + $0x88] sm:$0xff]
  %v187 = vld [vmem:[%s1 + $0x90] sm:$0xff]
  %v188 = vld [vmem:[%s1 + $0x98] sm:$0xff]
  %v189 = vld [vmem:[%s2] sm:$0x1]
  %v191 = vlaneseq
  %v192 = vshrl.u32 %v191, 7
  %v193 = vsub.s32 0, %v192
  %v194 = vrot.slane %v189, %v193
  %v196 = vsel %vm154, %v76, 0
  %v198 = vsel %vm154, %v78, 0
  %v200 = vsel %vm154, %v80, 0
  %v202 = vsel %vm154, %v87, 0
  %204 = vmatprep.subr.mxu0 0.0
  %205 = vmatpush1.msra.mxu0 %v169
  %206 = vmatprep.subr.mxu0 0.0
  %207 = vmatpush1.msra.mxu0 %v170
  %208 = vmatprep.subr.mxu0 0.0
  %209 = vmatpush1.msra.mxu0 %v171
  %210 = vmatprep.subr.mxu0 0.0
  %211 = vmatpush1.msra.mxu0 %v172
  %212 = vmatprep.subr.mxu0 0.0
  %213 = vmatpush1.msra.mxu0 %v173
  %214 = vmatprep.subr.mxu0 0.0
  %215 = vmatpush1.msra.mxu0 %v174
  %216 = vmatprep.subr.mxu0 0.0
  %217 = vmatpush1.msra.mxu0 %v175
  %218 = vmatprep.subr.mxu0 0.0
  %219 = vmatpush1.msra.mxu0 %v176
  %220 = vmatprep.subr.mxu0 0.0
  %221 = vmatpush1.msra.mxu0 %v177
  %222 = vmatprep.subr.mxu0 0.0
  %223 = vmatpush1.msra.mxu0 %v178
  %224 = vmatprep.subr.mxu0 0.0
  %225 = vmatpush1.msra.mxu0 %v179
  %226 = vmatprep.subr.mxu0 0.0
  %227 = vmatpush1.msra.mxu0 %v180
  %228 = vmatprep.subr.mxu0 0.0
  %229 = vmatpush1.msra.mxu0 %v181
  %230 = vmatprep.subr.mxu0 0.0
  %231 = vmatpush1.msra.mxu0 %v182
  %232 = vmatprep.subr.mxu0 0.0
  %233 = vmatpush1.msra.mxu0 %v183
  %234 = vmatprep.subr.mxu0 0.0
  %235 = vmatpush1.msra.mxu0 %v184
  %236 = vmatprep.subr.mxu0 0.0
  %237 = vmatpush1.msra.mxu0 %v185
  %238 = vmatprep.subr.mxu0 0.0
  %239 = vmatpush1.msra.mxu0 %v186
  %240 = vmatprep.subr.mxu0 0.0
  %241 = vmatpush1.msra.mxu0 %v187
  %242 = vmatprep.subr.mxu0 0.0
  %243 = vmatpush1.msra.mxu0 %v188
  %244 = vmatprep.subr.mxu0 0.0
  %245 = vmatpush1.msra.mxu0 0.0
  %246 = vmatprep.subr.mxu0 0.0
  %247 = vmatpush1.msra.mxu0 0.0
  %248 = vmatprep.subr.mxu0 0.0
  %249 = vmatpush1.msra.mxu0 0.0
  %250 = vmatprep.subr.mxu0 0.0
  %251 = vmatpush1.msra.mxu0 0.0
  %252 = vmatprep.subr.mxu0 0.0
  %253 = vmatpush1.msra.mxu0 0.0
  %254 = vmatprep.subr.mxu0 0.0
  %255 = vmatpush1.msra.mxu0 0.0
  %256 = vmatprep.subr.mxu0 0.0
  %257 = vmatpush1.msra.mxu0 0.0
  %258 = vmatprep.subr.mxu0 0.0
  %259 = vmatpush1.msra.mxu0 0.0
  %260 = vmatprep.subr.mxu0 0.0
  %261 = vmatpush1.msra.mxu0 0.0
  %262 = vmatprep.subr.mxu0 0.0
  %263 = vmatpush1.msra.mxu0 0.0
  %264 = vmatprep.subr.mxu0 0.0
  %265 = vmatpush1.msra.mxu0 0.0
  %266 = vmatprep.subr.mxu0 0.0
  %267 = vmatpush1.msra.mxu0 0.0
  %268 = vmatprep.mubr.f32.mxu0 %v196
  %269 = vmatmul.mubr.f32.gmra.mrb[0].mxu0 %v165
  %v270 = vpop.f32.mrb[0].mxu0
  %v271 = vadd.f32 %v194, %v270
  %v272 = vpop.f32.mrb[0].mxu0
  %273 = vmatprep.mubr.f32.mxu0 %v198
  %274 = vmatmul.mubr.f32.gmra.mrb[0].mxu0 %v166
  %v275 = vpop.f32.mrb[0].mxu0
  %v276 = vadd.f32 %v194, %v275
  %v277 = vpop.f32.mrb[0].mxu0
  %278 = vmatprep.mubr.f32.mxu0 %v200
  %279 = vmatmul.mubr.f32.gmra.mrb[0].mxu0 %v167
  %v280 = vpop.f32.mrb[0].mxu0
  %v281 = vadd.f32 %v194, %v280
  %v282 = vpop.f32.mrb[0].mxu0
  %283 = vmatprep.mubr.f32.mxu0 %v202
  %284 = vmatmul.mubr.f32.gmra.mrb[0].mxu0 %v168
  %v285 = vpop.f32.mrb[0].mxu0
  %v286 = vadd.f32 %v194, %v285
  %v287 = vpop.f32.mrb[0].mxu0
  %288 = vdwg.mxu0
  %v293 = vrot.slane %v271, 4
  %v294 = vrot.slane %v276, 4
  %v295 = vsel %vm52, %v293, %v294
  %v296 = vrot.slane %v281, 4
  %v297 = vsel %vm52, %v294, %v296
  %v298 = vrot.slane %v286, 4
  %v299 = vsel %vm52, %v296, %v298
  %v305 = vsel %vm52, 0.0, %v293
  %v306 = vsel %vm52, %v298, 0.0
  %v309 = vrot.slane %v305, 2
  %v310 = vrot.slane %v295, 2
  %v311 = vsel %vm34, %v309, %v310
  %v312 = vrot.slane %v297, 2
  %v313 = vsel %vm34, %v310, %v312
  %v314 = vrot.slane %v299, 2
  %v315 = vsel %vm34, %v312, %v314
  %v316 = vrot.slane %v306, 2
  %v317 = vsel %vm34, %v314, %v316
  %318 = vrot.lane.b32.xlu0 %v311, 32
  %v319 = vpop.permute.xlu0 %318
  %320 = vrot.lane.b32.xlu0 %v313, 32
  %v321 = vpop.permute.xlu0 %320
  %322 = vrot.lane.b32.xlu0 %v315, 32
  %v323 = vpop.permute.xlu0 %322
  %324 = vrot.lane.b32.xlu0 %v317, 32
  %v325 = vpop.permute.xlu0 %324
  %v330 = vrot.slane %v305, 4
  %v331 = vrot.slane %v295, 4
  %v332 = vsel %vm52, %v330, %v331
  %v333 = vrot.slane %v297, 4
  %v334 = vsel %vm52, %v331, %v333
  %v335 = vrot.slane %v299, 4
  %v336 = vsel %vm52, %v333, %v335
  %v337 = vrot.slane %v306, 4
  %v338 = vsel %vm52, %v335, %v337
  %339 = vrot.lane.b32.xlu0 %v332, 64
  %v340 = vpop.permute.xlu0 %339
  %341 = vrot.lane.b32.xlu0 %v334, 64
  %v342 = vpop.permute.xlu0 %341
  %343 = vrot.lane.b32.xlu0 %v336, 64
  %v344 = vpop.permute.xlu0 %343
  %345 = vrot.lane.b32.xlu0 %v338, 64
  %v346 = vpop.permute.xlu0 %345
  %v351 = vrot.slane %v305, 6
  %v352 = vrot.slane %v295, 6
  %v353 = vsel %vm132, %v351, %v352
  %v354 = vrot.slane %v297, 6
  %v355 = vsel %vm132, %v352, %v354
  %v356 = vrot.slane %v299, 6
  %v357 = vsel %vm132, %v354, %v356
  %v358 = vrot.slane %v306, 6
  %v359 = vsel %vm132, %v356, %v358
  %360 = vrot.lane.b32.xlu0 %v353, 96
  %v361 = vpop.permute.xlu0 %360
  %362 = vrot.lane.b32.xlu0 %v355, 96
  %v363 = vpop.permute.xlu0 %362
  %364 = vrot.lane.b32.xlu0 %v357, 96
  %v365 = vpop.permute.xlu0 %364
  %366 = vrot.lane.b32.xlu0 %v359, 96
  %v367 = vpop.permute.xlu0 %366
  %v372 = vsel %vm154, %v305, %v319
  %v373 = vsel %vm154, %v295, %v321
  %v374 = vsel %vm154, %v297, %v323
  %v375 = vsel %vm154, %v299, %v325
  %v376 = vsel %vm159, %v372, %v340
  %v377 = vsel %vm159, %v373, %v342
  %v378 = vsel %vm159, %v374, %v344
  %v379 = vsel %vm159, %v375, %v346
  %v380 = vsel %vm164, %v376, %v361
  %v381 = vsel %vm164, %v377, %v363
  %v382 = vsel %vm164, %v378, %v365
  %v383 = vsel %vm164, %v379, %v367
  %v384 = vld [vmem:[%s3] sm:$0xff]
  %v385 = vld [vmem:[%s3 + $0x8] sm:$0xff]
  %v386 = vld [vmem:[%s3 + $0x10] sm:$0xff]
  %v387 = vld [vmem:[%s3 + $0x18] sm:$0xff]
  %v388 = vld [vmem:[%s3 + $0x20] sm:$0xff]
  %v389 = vld [vmem:[%s3 + $0x28] sm:$0xff]
  %v390 = vld [vmem:[%s3 + $0x30] sm:$0xff]
  %v391 = vld [vmem:[%s3 + $0x38] sm:$0xff]
  %v392 = vld [vmem:[%s3 + $0x40] sm:$0xff]
  %v393 = vld [vmem:[%s3 + $0x48] sm:$0xff]
  %v394 = vld [vmem:[%s3 + $0x50] sm:$0xff]
  %v395 = vld [vmem:[%s3 + $0x58] sm:$0xff]
  %v396 = vld [vmem:[%s3 + $0x60] sm:$0xff]
  %v397 = vld [vmem:[%s3 + $0x68] sm:$0xff]
  %v398 = vld [vmem:[%s3 + $0x70] sm:$0xff]
  %v399 = vld [vmem:[%s3 + $0x78] sm:$0xff]
  %v400 = vld [vmem:[%s3 + $0x80] sm:$0xff]
  %v401 = vld [vmem:[%s3 + $0x88] sm:$0xff]
  %v402 = vld [vmem:[%s3 + $0x90] sm:$0xff]
  %v403 = vld [vmem:[%s3 + $0x98] sm:$0xff]
  %v404 = vld [vmem:[%s4] sm:$0x1]
  %v406 = vlaneseq
  %v407 = vshrl.u32 %v406, 7
  %v408 = vsub.s32 0, %v407
  %v409 = vrot.slane %v404, %v408
  %v411 = vsel %vm154, %v295, 0
  %v413 = vsel %vm154, %v297, 0
  %v415 = vsel %vm154, %v299, 0
  %v417 = vsel %vm154, %v306, 0
  %419 = vmatprep.subr.mxu0 0.0
  %420 = vmatpush1.msra.mxu0 %v384
  %421 = vmatprep.subr.mxu0 0.0
  %422 = vmatpush1.msra.mxu0 %v385
  %423 = vmatprep.subr.mxu0 0.0
  %424 = vmatpush1.msra.mxu0 %v386
  %425 = vmatprep.subr.mxu0 0.0
  %426 = vmatpush1.msra.mxu0 %v387
  %427 = vmatprep.subr.mxu0 0.0
  %428 = vmatpush1.msra.mxu0 %v388
  %429 = vmatprep.subr.mxu0 0.0
  %430 = vmatpush1.msra.mxu0 %v389
  %431 = vmatprep.subr.mxu0 0.0
  %432 = vmatpush1.msra.mxu0 %v390
  %433 = vmatprep.subr.mxu0 0.0
  %434 = vmatpush1.msra.mxu0 %v391
  %435 = vmatprep.subr.mxu0 0.0
  %436 = vmatpush1.msra.mxu0 %v392
  %437 = vmatprep.subr.mxu0 0.0
  %438 = vmatpush1.msra.mxu0 %v393
  %439 = vmatprep.subr.mxu0 0.0
  %440 = vmatpush1.msra.mxu0 %v394
  %441 = vmatprep.subr.mxu0 0.0
  %442 = vmatpush1.msra.mxu0 %v395
  %443 = vmatprep.subr.mxu0 0.0
  %444 = vmatpush1.msra.mxu0 %v396
  %445 = vmatprep.subr.mxu0 0.0
  %446 = vmatpush1.msra.mxu0 %v397
  %447 = vmatprep.subr.mxu0 0.0
  %448 = vmatpush1.msra.mxu0 %v398
  %449 = vmatprep.subr.mxu0 0.0
  %450 = vmatpush1.msra.mxu0 %v399
  %451 = vmatprep.subr.mxu0 0.0
  %452 = vmatpush1.msra.mxu0 %v400
  %453 = vmatprep.subr.mxu0 0.0
  %454 = vmatpush1.msra.mxu0 %v401
  %455 = vmatprep.subr.mxu0 0.0
  %456 = vmatpush1.msra.mxu0 %v402
  %457 = vmatprep.subr.mxu0 0.0
  %458 = vmatpush1.msra.mxu0 %v403
  %459 = vmatprep.subr.mxu0 0.0
  %460 = vmatpush1.msra.mxu0 0.0
  %461 = vmatprep.subr.mxu0 0.0
  %462 = vmatpush1.msra.mxu0 0.0
  %463 = vmatprep.subr.mxu0 0.0
  %464 = vmatpush1.msra.mxu0 0.0
  %465 = vmatprep.subr.mxu0 0.0
  %466 = vmatpush1.msra.mxu0 0.0
  %467 = vmatprep.subr.mxu0 0.0
  %468 = vmatpush1.msra.mxu0 0.0
  %469 = vmatprep.subr.mxu0 0.0
  %470 = vmatpush1.msra.mxu0 0.0
  %471 = vmatprep.subr.mxu0 0.0
  %472 = vmatpush1.msra.mxu0 0.0
  %473 = vmatprep.subr.mxu0 0.0
  %474 = vmatpush1.msra.mxu0 0.0
  %475 = vmatprep.subr.mxu0 0.0
  %476 = vmatpush1.msra.mxu0 0.0
  %477 = vmatprep.subr.mxu0 0.0
  %478 = vmatpush1.msra.mxu0 0.0
  %479 = vmatprep.subr.mxu0 0.0
  %480 = vmatpush1.msra.mxu0 0.0
  %481 = vmatprep.subr.mxu0 0.0
  %482 = vmatpush1.msra.mxu0 0.0
  %483 = vmatprep.mubr.f32.mxu0 %v411
  %484 = vmatmul.mubr.f32.gmra.mrb[0].mxu0 %v380
  %v485 = vpop.f32.mrb[0].mxu0
  %v486 = vadd.f32 %v409, %v485
  %v487 = vpop.f32.mrb[0].mxu0
  %488 = vmatprep.mubr.f32.mxu0 %v413
  %489 = vmatmul.mubr.f32.gmra.mrb[0].mxu0 %v381
  %v490 = vpop.f32.mrb[0].mxu0
  %v491 = vadd.f32 %v409, %v490
  %v492 = vpop.f32.mrb[0].mxu0
  %493 = vmatprep.mubr.f32.mxu0 %v415
  %494 = vmatmul.mubr.f32.gmra.mrb[0].mxu0 %v382
  %v495 = vpop.f32.mrb[0].mxu0
  %v496 = vadd.f32 %v409, %v495
  %v497 = vpop.f32.mrb[0].mxu0
  %498 = vmatprep.mubr.f32.mxu0 %v417
  %499 = vmatmul.mubr.f32.gmra.mrb[0].mxu0 %v383
  %v500 = vpop.f32.mrb[0].mxu0
  %v501 = vadd.f32 %v409, %v500
  %v502 = vpop.f32.mrb[0].mxu0
  %503 = vdwg.mxu0
  %v504 = vld [vmem:[%s5] sm:$0xff]
  %v505 = vld [vmem:[%s5 + $0x8] sm:$0xff]
  %v506 = vld [vmem:[%s5 + $0x10] sm:$0xff]
  %v507 = vld [vmem:[%s5 + $0x18] sm:$0xff]
  %v508 = vpack.c.bf16 %v505, %v504
  %v509 = vpack.c.bf16 %v507, %v506
  %v511 = vsel %vm154, 0, 0
  %513 = vmatprep.subr.bf16.mxu0 0
  %514 = vmatpush1.bf16.msra.mxu0 %v508
  %515 = vmatprep.subr.bf16.mxu0 0
  %516 = vmatpush1.bf16.msra.mxu0 %v509
  %517 = vmatprep.subr.bf16.mxu0 0
  %518 = vmatpush1.bf16.msra.mxu0 0
  %519 = vmatprep.subr.bf16.mxu0 0
  %520 = vmatpush1.bf16.msra.mxu0 0
  %521 = vmatprep.subr.bf16.mxu0 0
  %522 = vmatpush1.bf16.msra.mxu0 0
  %523 = vmatprep.subr.bf16.mxu0 0
  %524 = vmatpush1.bf16.msra.mxu0 0
  %525 = vmatprep.subr.bf16.mxu0 0
  %526 = vmatpush1.bf16.msra.mxu0 0
  %527 = vmatprep.subr.bf16.mxu0 0
  %528 = vmatpush1.bf16.msra.mxu0 0
  %529 = vmatprep.subr.bf16.mxu0 0
  %530 = vmatpush1.bf16.msra.mxu0 0
  %531 = vmatprep.subr.bf16.mxu0 0
  %532 = vmatpush1.bf16.msra.mxu0 0
  %533 = vmatprep.subr.bf16.mxu0 0
  %534 = vmatpush1.bf16.msra.mxu0 0
  %535 = vmatprep.subr.bf16.mxu0 0
  %536 = vmatpush1.bf16.msra.mxu0 0
  %537 = vmatprep.subr.bf16.mxu0 0
  %538 = vmatpush1.bf16.msra.mxu0 0
  %539 = vmatprep.subr.bf16.mxu0 0
  %540 = vmatpush1.bf16.msra.mxu0 0
  %541 = vmatprep.subr.bf16.mxu0 0
  %542 = vmatpush1.bf16.msra.mxu0 0
  %543 = vmatprep.subr.bf16.mxu0 0
  %544 = vmatpush1.bf16.msra.mxu0 0
  %545 = vmatprep.mubr.bf16.mxu0 0
  %546 = vmatmul.mubr.bf16.gmra.mrb[0].mxu0 %v511
  %v547 = vpop.f32.mrb[0].mxu0
  %v548 = vadd.f32 0.0, %v547
  %v549 = vpop.f32.mrb[0].mxu0
  %v550 = vpop.f32.mrb[0].mxu0
  %v551 = vpop.f32.mrb[0].mxu0
  %552 = vdwg.mxu0
  %v553 = vadd.f32 %v486, %v548
  %v554 = vxor.u32 %v553, 2147483648
  %v555 = vmul.f32 %v554, 1.442695
  %v556 = vpow.pop %v555
  %v557 = vadd.f32 %v556, 1.0
  %v558 = vrcp.pop %v557
  %v559 = vmul.f32 1.0, %v558
  %v560 = vtanh.pop %v553
  %v561 = vmul.f32 %v559, 0.0
  %563 = vrot.lane.b32.xlu0 %v560, 64
  %v564 = vpop.permute.xlu0 %563
  %v566 = vmul.f32 %v559, %v564
  %568 = vrot.lane.b32.xlu0 %v566, 32
  %v569 = vpop.permute.xlu0 %568
  %v571 = vadd.f32 %v561, %v569
  %v572 = vtanh.pop %v571
  %574 = vrot.lane.b32.xlu0 %v572, 64
  %v575 = vpop.permute.xlu0 %574
  %v577 = vmul.f32 %v559, %v575
  %v578 = vpack.c.bf16 %v577, %v577
  %580 = vrot.lane.b32.xlu0 %v578, 32
  %v581 = vpop.permute.xlu0 %580
  %v583 = vsel %vm154, %v581, 0
  %585 = vmatprep.subr.bf16.mxu0 0
  %586 = vmatpush1.bf16.msra.mxu0 %v508
  %587 = vmatprep.subr.bf16.mxu0 0
  %588 = vmatpush1.bf16.msra.mxu0 %v509
  %589 = vmatprep.subr.bf16.mxu0 0
  %590 = vmatpush1.bf16.msra.mxu0 0
  %591 = vmatprep.subr.bf16.mxu0 0
  %592 = vmatpush1.bf16.msra.mxu0 0
  %593 = vmatprep.subr.bf16.mxu0 0
  %594 = vmatpush1.bf16.msra.mxu0 0
  %595 = vmatprep.subr.bf16.mxu0 0
  %596 = vmatpush1.bf16.msra.mxu0 0
  %597 = vmatprep.subr.bf16.mxu0 0
  %598 = vmatpush1.bf16.msra.mxu0 0
  %599 = vmatprep.subr.bf16.mxu0 0
  %600 = vmatpush1.bf16.msra.mxu0 0
  %601 = vmatprep.subr.bf16.mxu0 0
  %602 = vmatpush1.bf16.msra.mxu0 0
  %603 = vmatprep.subr.bf16.mxu0 0
  %604 = vmatpush1.bf16.msra.mxu0 0
  %605 = vmatprep.subr.bf16.mxu0 0
  %606 = vmatpush1.bf16.msra.mxu0 0
  %607 = vmatprep.subr.bf16.mxu0 0
  %608 = vmatpush1.bf16.msra.mxu0 0
  %609 = vmatprep.subr.bf16.mxu0 0
  %610 = vmatpush1.bf16.msra.mxu0 0
  %611 = vmatprep.subr.bf16.mxu0 0
  %612 = vmatpush1.bf16.msra.mxu0 0
  %613 = vmatprep.subr.bf16.mxu0 0
  %614 = vmatpush1.bf16.msra.mxu0 0
  %615 = vmatprep.subr.bf16.mxu0 0
  %616 = vmatpush1.bf16.msra.mxu0 0
  %617 = vmatprep.mubr.bf16.mxu0 0
  %618 = vmatmul.mubr.bf16.gmra.mrb[0].mxu0 %v583
  %v619 = vpop.f32.mrb[0].mxu0
  %v620 = vadd.f32 0.0, %v619
  %v621 = vpop.f32.mrb[0].mxu0
  %v622 = vpop.f32.mrb[0].mxu0
  %v623 = vpop.f32.mrb[0].mxu0
  %624 = vdwg.mxu0
  %v626 = vrot.slane %v620, 6
  %v628 = vadd.f32 %v486, %v626
  %v629 = vxor.u32 %v628, 2147483648
  %v630 = vmul.f32 %v629, 1.442695
  %v631 = vpow.pop %v630
  %v632 = vadd.f32 %v631, 1.0
  %v633 = vrcp.pop %v632
  %v634 = vmul.f32 1.0, %v633
  %v635 = vtanh.pop %v628
  %v637 = vrot.slane %v571, 6
  %v639 = vmul.f32 %v634, %v637
  %641 = vrot.lane.b32.xlu0 %v635, 64
  %v642 = vpop.permute.xlu0 %641
  %v644 = vmul.f32 %v634, %v642
  %646 = vrot.lane.b32.xlu0 %v644, 32
  %v647 = vpop.permute.xlu0 %646
  %v649 = vadd.f32 %v639, %v647
  %v650 = vtanh.pop %v649
  %652 = vrot.lane.b32.xlu0 %v650, 64
  %v653 = vpop.permute.xlu0 %652
  %v655 = vmul.f32 %v634, %v653
  %v656 = vpack.c.bf16 %v655, %v655
  %v658 = vrot.slane %v656, 1
  %659 = vrot.lane.b32.xlu0 %v658, 32
  %v660 = vpop.permute.xlu0 %659
  %v662 = vsel %vm154, %v660, 0
  %664 = vmatprep.subr.bf16.mxu0 0
  %665 = vmatpush1.bf16.msra.mxu0 %v508
  %666 = vmatprep.subr.bf16.mxu0 0
  %667 = vmatpush1.bf16.msra.mxu0 %v509
  %668 = vmatprep.subr.bf16.mxu0 0
  %669 = vmatpush1.bf16.msra.mxu0 0
  %670 = vmatprep.subr.bf16.mxu0 0
  %671 = vmatpush1.bf16.msra.mxu0 0
  %672 = vmatprep.subr.bf16.mxu0 0
  %673 = vmatpush1.bf16.msra.mxu0 0
  %674 = vmatprep.subr.bf16.mxu0 0
  %675 = vmatpush1.bf16.msra.mxu0 0
  %676 = vmatprep.subr.bf16.mxu0 0
  %677 = vmatpush1.bf16.msra.mxu0 0
  %678 = vmatprep.subr.bf16.mxu0 0
  %679 = vmatpush1.bf16.msra.mxu0 0
  %680 = vmatprep.subr.bf16.mxu0 0
  %681 = vmatpush1.bf16.msra.mxu0 0
  %682 = vmatprep.subr.bf16.mxu0 0
  %683 = vmatpush1.bf16.msra.mxu0 0
  %684 = vmatprep.subr.bf16.mxu0 0
  %685 = vmatpush1.bf16.msra.mxu0 0
  %686 = vmatprep.subr.bf16.mxu0 0
  %687 = vmatpush1.bf16.msra.mxu0 0
  %688 = vmatprep.subr.bf16.mxu0 0
  %689 = vmatpush1.bf16.msra.mxu0 0
  %690 = vmatprep.subr.bf16.mxu0 0
  %691 = vmatpush1.bf16.msra.mxu0 0
  %692 = vmatprep.subr.bf16.mxu0 0
  %693 = vmatpush1.bf16.msra.mxu0 0
  %694 = vmatprep.subr.bf16.mxu0 0
  %695 = vmatpush1.bf16.msra.mxu0 0
  %696 = vmatprep.mubr.bf16.mxu0 0
  %697 = vmatmul.mubr.bf16.gmra.mrb[0].mxu0 %v662
  %v698 = vpop.f32.mrb[0].mxu0
  %v699 = vadd.f32 0.0, %v698
  %v700 = vpop.f32.mrb[0].mxu0
  %v701 = vpop.f32.mrb[0].mxu0
  %v702 = vpop.f32.mrb[0].mxu0
  %703 = vdwg.mxu0
  %v705 = vrot.slane %v699, 4
  %v707 = vadd.f32 %v486, %v705
  %v708 = vxor.u32 %v707, 2147483648
  %v709 = vmul.f32 %v708, 1.442695
  %v710 = vpow.pop %v709
  %v711 = vadd.f32 %v710, 1.0
  %v712 = vrcp.pop %v711
  %v713 = vmul.f32 1.0, %v712
  %v714 = vtanh.pop %v707
  %v716 = vrot.slane %v649, 6
  %v718 = vmul.f32 %v713, %v716
  %720 = vrot.lane.b32.xlu0 %v714, 64
  %v721 = vpop.permute.xlu0 %720
  %v723 = vmul.f32 %v713, %v721
  %725 = vrot.lane.b32.xlu0 %v723, 32
  %v726 = vpop.permute.xlu0 %725
  %v728 = vadd.f32 %v718, %v726
  %v729 = vtanh.pop %v728
  %731 = vrot.lane.b32.xlu0 %v729, 64
  %v732 = vpop.permute.xlu0 %731
  %v734 = vmul.f32 %v713, %v732
  %v735 = vpack.c.bf16 %v734, %v734
  %v737 = vrot.slane %v735, 2
  %738 = vrot.lane.b32.xlu0 %v737, 32
  %v739 = vpop.permute.xlu0 %738
  %v741 = vsel %vm154, %v739, 0
  %743 = vmatprep.subr.bf16.mxu0 0
  %744 = vmatpush1.bf16.msra.mxu0 %v508
  %745 = vmatprep.subr.bf16.mxu0 0
  %746 = vmatpush1.bf16.msra.mxu0 %v509
  %747 = vmatprep.subr.bf16.mxu0 0
  %748 = vmatpush1.bf16.msra.mxu0 0
  %749 = vmatprep.subr.bf16.mxu0 0
  %750 = vmatpush1.bf16.msra.mxu0 0
  %751 = vmatprep.subr.bf16.mxu0 0
  %752 = vmatpush1.bf16.msra.mxu0 0
  %753 = vmatprep.subr.bf16.mxu0 0
  %754 = vmatpush1.bf16.msra.mxu0 0
  %755 = vmatprep.subr.bf16.mxu0 0
  %756 = vmatpush1.bf16.msra.mxu0 0
  %757 = vmatprep.subr.bf16.mxu0 0
  %758 = vmatpush1.bf16.msra.mxu0 0
  %759 = vmatprep.subr.bf16.mxu0 0
  %760 = vmatpush1.bf16.msra.mxu0 0
  %761 = vmatprep.subr.bf16.mxu0 0
  %762 = vmatpush1.bf16.msra.mxu0 0
  %763 = vmatprep.subr.bf16.mxu0 0
  %764 = vmatpush1.bf16.msra.mxu0 0
  %765 = vmatprep.subr.bf16.mxu0 0
  %766 = vmatpush1.bf16.msra.mxu0 0
  %767 = vmatprep.subr.bf16.mxu0 0
  %768 = vmatpush1.bf16.msra.mxu0 0
  %769 = vmatprep.subr.bf16.mxu0 0
  %770 = vmatpush1.bf16.msra.mxu0 0
  %771 = vmatprep.subr.bf16.mxu0 0
  %772 = vmatpush1.bf16.msra.mxu0 0
  %773 = vmatprep.subr.bf16.mxu0 0
  %774 = vmatpush1.bf16.msra.mxu0 0
  %775 = vmatprep.mubr.bf16.mxu0 0
  %776 = vmatmul.mubr.bf16.gmra.mrb[0].mxu0 %v741
  %v777 = vpop.f32.mrb[0].mxu0
  %v778 = vadd.f32 0.0, %v777
  %v779 = vpop.f32.mrb[0].mxu0
  %v780 = vpop.f32.mrb[0].mxu0
  %v781 = vpop.f32.mrb[0].mxu0
  %782 = vdwg.mxu0
  %v784 = vrot.slane %v778, 2
  %v786 = vadd.f32 %v486, %v784
  %v787 = vxor.u32 %v786, 2147483648
  %v788 = vmul.f32 %v787, 1.442695
  %v789 = vpow.pop %v788
  %v790 = vadd.f32 %v789, 1.0
  %v791 = vrcp.pop %v790
  %v792 = vmul.f32 1.0, %v791
  %v793 = vtanh.pop %v786
  %v795 = vrot.slane %v728, 6
  %v797 = vmul.f32 %v792, %v795
  %799 = vrot.lane.b32.xlu0 %v793, 64
  %v800 = vpop.permute.xlu0 %799
  %v802 = vmul.f32 %v792, %v800
  %804 = vrot.lane.b32.xlu0 %v802, 32
  %v805 = vpop.permute.xlu0 %804
  %v807 = vadd.f32 %v797, %v805
  %v808 = vtanh.pop %v807
  %810 = vrot.lane.b32.xlu0 %v808, 64
  %v811 = vpop.permute.xlu0 %810
  %v813 = vmul.f32 %v792, %v811
  %v814 = vpack.c.bf16 %v813, %v813
  %v816 = vrot.slane %v814, 3
  %817 = vrot.lane.b32.xlu0 %v816, 32
  %v818 = vpop.permute.xlu0 %817
  %v820 = vsel %vm154, %v818, 0
  %822 = vmatprep.subr.bf16.mxu0 0
  %823 = vmatpush1.bf16.msra.mxu0 %v508
  %824 = vmatprep.subr.bf16.mxu0 0
  %825 = vmatpush1.bf16.msra.mxu0 %v509
  %826 = vmatprep.subr.bf16.mxu0 0
  %827 = vmatpush1.bf16.msra.mxu0 0
  %828 = vmatprep.subr.bf16.mxu0 0
  %829 = vmatpush1.bf16.msra.mxu0 0
  %830 = vmatprep.subr.bf16.mxu0 0
  %831 = vmatpush1.bf16.msra.mxu0 0
  %832 = vmatprep.subr.bf16.mxu0 0
  %833 = vmatpush1.bf16.msra.mxu0 0
  %834 = vmatprep.subr.bf16.mxu0 0
  %835 = vmatpush1.bf16.msra.mxu0 0
  %836 = vmatprep.subr.bf16.mxu0 0
  %837 = vmatpush1.bf16.msra.mxu0 0
  %838 = vmatprep.subr.bf16.mxu0 0
  %839 = vmatpush1.bf16.msra.mxu0 0
  %840 = vmatprep.subr.bf16.mxu0 0
  %841 = vmatpush1.bf16.msra.mxu0 0
  %842 = vmatprep.subr.bf16.mxu0 0
  %843 = vmatpush1.bf16.msra.mxu0 0
  %844 = vmatprep.subr.bf16.mxu0 0
  %845 = vmatpush1.bf16.msra.mxu0 0
  %846 = vmatprep.subr.bf16.mxu0 0
  %847 = vmatpush1.bf16.msra.mxu0 0
  %848 = vmatprep.subr.bf16.mxu0 0
  %849 = vmatpush1.bf16.msra.mxu0 0
  %850 = vmatprep.subr.bf16.mxu0 0
  %851 = vmatpush1.bf16.msra.mxu0 0
  %852 = vmatprep.subr.bf16.mxu0 0
  %853 = vmatpush1.bf16.msra.mxu0 0
  %854 = vmatprep.mubr.bf16.mxu0 0
  %855 = vmatmul.mubr.bf16.gmra.mrb[0].mxu0 %v820
  %v856 = vpop.f32.mrb[0].mxu0
  %v857 = vadd.f32 0.0, %v856
  %v858 = vpop.f32.mrb[0].mxu0
  %v859 = vpop.f32.mrb[0].mxu0
  %v860 = vpop.f32.mrb[0].mxu0
  %861 = vdwg.mxu0
  %v862 = vadd.f32 %v491, %v857
  %v863 = vxor.u32 %v862, 2147483648
  %v864 = vmul.f32 %v863, 1.442695
  %v865 = vpow.pop %v864
  %v866 = vadd.f32 %v865, 1.0
  %v867 = vrcp.pop %v866
  %v868 = vmul.f32 1.0, %v867
  %v869 = vtanh.pop %v862
  %v871 = vrot.slane %v807, 6
  %v873 = vmul.f32 %v868, %v871
  %875 = vrot.lane.b32.xlu0 %v869, 64
  %v876 = vpop.permute.xlu0 %875
  %v878 = vmul.f32 %v868, %v876
  %880 = vrot.lane.b32.xlu0 %v878, 32
  %v881 = vpop.permute.xlu0 %880
  %v883 = vadd.f32 %v873, %v881
  %v884 = vtanh.pop %v883
  %886 = vrot.lane.b32.xlu0 %v884, 64
  %v887 = vpop.permute.xlu0 %886
  %v889 = vmul.f32 %v868, %v887
  %v890 = vpack.c.bf16 %v889, %v889
  %892 = vrot.lane.b32.xlu0 %v890, 32
  %v893 = vpop.permute.xlu0 %892
  %v895 = vsel %vm154, %v893, 0
  %897 = vmatprep.subr.bf16.mxu0 0
  %898 = vmatpush1.bf16.msra.mxu0 %v508
  %899 = vmatprep.subr.bf16.mxu0 0
  %900 = vmatpush1.bf16.msra.mxu0 %v509
  %901 = vmatprep.subr.bf16.mxu0 0
  %902 = vmatpush1.bf16.msra.mxu0 0
  %903 = vmatprep.subr.bf16.mxu0 0
  %904 = vmatpush1.bf16.msra.mxu0 0
  %905 = vmatprep.subr.bf16.mxu0 0
  %906 = vmatpush1.bf16.msra.mxu0 0
  %907 = vmatprep.subr.bf16.mxu0 0
  %908 = vmatpush1.bf16.msra.mxu0 0
  %909 = vmatprep.subr.bf16.mxu0 0
  %910 = vmatpush1.bf16.msra.mxu0 0
  %911 = vmatprep.subr.bf16.mxu0 0
  %912 = vmatpush1.bf16.msra.mxu0 0
  %913 = vmatprep.subr.bf16.mxu0 0
  %914 = vmatpush1.bf16.msra.mxu0 0
  %915 = vmatprep.subr.bf16.mxu0 0
  %916 = vmatpush1.bf16.msra.mxu0 0
  %917 = vmatprep.subr.bf16.mxu0 0
  %918 = vmatpush1.bf16.msra.mxu0 0
  %919 = vmatprep.subr.bf16.mxu0 0
  %920 = vmatpush1.bf16.msra.mxu0 0
  %921 = vmatprep.subr.bf16.mxu0 0
  %922 = vmatpush1.bf16.msra.mxu0 0
  %923 = vmatprep.subr.bf16.mxu0 0
  %924 = vmatpush1.bf16.msra.mxu0 0
  %925 = vmatprep.subr.bf16.mxu0 0
  %926 = vmatpush1.bf16.msra.mxu0 0
  %927 = vmatprep.subr.bf16.mxu0 0
  %928 = vmatpush1.bf16.msra.mxu0 0
  %929 = vmatprep.mubr.bf16.mxu0 0
  %930 = vmatmul.mubr.bf16.gmra.mrb[0].mxu0 %v895
  %v931 = vpop.f32.mrb[0].mxu0
  %v932 = vadd.f32 0.0, %v931
  %v933 = vpop.f32.mrb[0].mxu0
  %v934 = vpop.f32.mrb[0].mxu0
  %v935 = vpop.f32.mrb[0].mxu0
  %936 = vdwg.mxu0
  %v938 = vrot.slane %v932, 6
  %v940 = vadd.f32 %v491, %v938
  %v941 = vxor.u32 %v940, 2147483648
  %v942 = vmul.f32 %v941, 1.442695
  %v943 = vpow.pop %v942
  %v944 = vadd.f32 %v943, 1.0
  %v945 = vrcp.pop %v944
  %v946 = vmul.f32 1.0, %v945
  %v947 = vtanh.pop %v940
  %v949 = vrot.slane %v883, 6
  %v951 = vmul.f32 %v946, %v949
  %953 = vrot.lane.b32.xlu0 %v947, 64
  %v954 = vpop.permute.xlu0 %953
  %v956 = vmul.f32 %v946, %v954
  %958 = vrot.lane.b32.xlu0 %v956, 32
  %v959 = vpop.permute.xlu0 %958
  %v961 = vadd.f32 %v951, %v959
  %v962 = vtanh.pop %v961
  %964 = vrot.lane.b32.xlu0 %v962, 64
  %v965 = vpop.permute.xlu0 %964
  %v967 = vmul.f32 %v946, %v965
  %v968 = vpack.c.bf16 %v967, %v967
  %v970 = vrot.slane %v968, 1
  %971 = vrot.lane.b32.xlu0 %v970, 32
  %v972 = vpop.permute.xlu0 %971
  %v974 = vsel %vm154, %v972, 0
  %976 = vmatprep.subr.bf16.mxu0 0
  %977 = vmatpush1.bf16.msra.mxu0 %v508
  %978 = vmatprep.subr.bf16.mxu0 0
  %979 = vmatpush1.bf16.msra.mxu0 %v509
  %980 = vmatprep.subr.bf16.mxu0 0
  %981 = vmatpush1.bf16.msra.mxu0 0
  %982 = vmatprep.subr.bf16.mxu0 0
  %983 = vmatpush1.bf16.msra.mxu0 0
  %984 = vmatprep.subr.bf16.mxu0 0
  %985 = vmatpush1.bf16.msra.mxu0 0
  %986 = vmatprep.subr.bf16.mxu0 0
  %987 = vmatpush1.bf16.msra.mxu0 0
  %988 = vmatprep.subr.bf16.mxu0 0
  %989 = vmatpush1.bf16.msra.mxu0 0
  %990 = vmatprep.subr.bf16.mxu0 0
  %991 = vmatpush1.bf16.msra.mxu0 0
  %992 = vmatprep.subr.bf16.mxu0 0
  %993 = vmatpush1.bf16.msra.mxu0 0
  %994 = vmatprep.subr.bf16.mxu0 0
  %995 = vmatpush1.bf16.msra.mxu0 0
  %996 = vmatprep.subr.bf16.mxu0 0
  %997 = vmatpush1.bf16.msra.mxu0 0
  %998 = vmatprep.subr.bf16.mxu0 0
  %999 = vmatpush1.bf16.msra.mxu0 0
  %1000 = vmatprep.subr.bf16.mxu0 0
  %1001 = vmatpush1.bf16.msra.mxu0 0
  %1002 = vmatprep.subr.bf16.mxu0 0
  %1003 = vmatpush1.bf16.msra.mxu0 0
  %1004 = vmatprep.subr.bf16.mxu0 0
  %1005 = vmatpush1.bf16.msra.mxu0 0
  %1006 = vmatprep.subr.bf16.mxu0 0
  %1007 = vmatpush1.bf16.msra.mxu0 0
  %1008 = vmatprep.mubr.bf16.mxu0 0
  %1009 = vmatmul.mubr.bf16.gmra.mrb[0].mxu0 %v974
  %v1010 = vpop.f32.mrb[0].mxu0
  %v1011 = vadd.f32 0.0, %v1010
  %v1012 = vpop.f32.mrb[0].mxu0
  %v1013 = vpop.f32.mrb[0].mxu0
  %v1014 = vpop.f32.mrb[0].mxu0
  %1015 = vdwg.mxu0
  %v1017 = vrot.slane %v1011, 4
  %v1019 = vadd.f32 %v491, %v1017
  %v1020 = vxor.u32 %v1019, 2147483648
  %v1021 = vmul.f32 %v1020, 1.442695
  %v1022 = vpow.pop %v1021
  %v1023 = vadd.f32 %v1022, 1.0
  %v1024 = vrcp.pop %v1023
  %v1025 = vmul.f32 1.0, %v1024
  %v1026 = vtanh.pop %v1019
  %v1028 = vrot.slane %v961, 6
  %v1030 = vmul.f32 %v1025, %v1028
  %1032 = vrot.lane.b32.xlu0 %v1026, 64
  %v1033 = vpop.permute.xlu0 %1032
  %v1035 = vmul.f32 %v1025, %v1033
  %1037 = vrot.lane.b32.xlu0 %v1035, 32
  %v1038 = vpop.permute.xlu0 %1037
  %v1040 = vadd.f32 %v1030, %v1038
  %v1041 = vtanh.pop %v1040
  %1043 = vrot.lane.b32.xlu0 %v1041, 64
  %v1044 = vpop.permute.xlu0 %1043
  %v1046 = vmul.f32 %v1025, %v1044
  %v1047 = vpack.c.bf16 %v1046, %v1046
  %v1049 = vrot.slane %v1047, 2
  %1050 = vrot.lane.b32.xlu0 %v1049, 32
  %v1051 = vpop.permute.xlu0 %1050
  %v1053 = vsel %vm154, %v1051, 0
  %1055 = vmatprep.subr.bf16.mxu0 0
  %1056 = vmatpush1.bf16.msra.mxu0 %v508
  %1057 = vmatprep.subr.bf16.mxu0 0
  %1058 = vmatpush1.bf16.msra.mxu0 %v509
  %1059 = vmatprep.subr.bf16.mxu0 0
  %1060 = vmatpush1.bf16.msra.mxu0 0
  %1061 = vmatprep.subr.bf16.mxu0 0
  %1062 = vmatpush1.bf16.msra.mxu0 0
  %1063 = vmatprep.subr.bf16.mxu0 0
  %1064 = vmatpush1.bf16.msra.mxu0 0
  %1065 = vmatprep.subr.bf16.mxu0 0
  %1066 = vmatpush1.bf16.msra.mxu0 0
  %1067 = vmatprep.subr.bf16.mxu0 0
  %1068 = vmatpush1.bf16.msra.mxu0 0
  %1069 = vmatprep.subr.bf16.mxu0 0
  %1070 = vmatpush1.bf16.msra.mxu0 0
  %1071 = vmatprep.subr.bf16.mxu0 0
  %1072 = vmatpush1.bf16.msra.mxu0 0
  %1073 = vmatprep.subr.bf16.mxu0 0
  %1074 = vmatpush1.bf16.msra.mxu0 0
  %1075 = vmatprep.subr.bf16.mxu0 0
  %1076 = vmatpush1.bf16.msra.mxu0 0
  %1077 = vmatprep.subr.bf16.mxu0 0
  %1078 = vmatpush1.bf16.msra.mxu0 0
  %1079 = vmatprep.subr.bf16.mxu0 0
  %1080 = vmatpush1.bf16.msra.mxu0 0
  %1081 = vmatprep.subr.bf16.mxu0 0
  %1082 = vmatpush1.bf16.msra.mxu0 0
  %1083 = vmatprep.subr.bf16.mxu0 0
  %1084 = vmatpush1.bf16.msra.mxu0 0
  %1085 = vmatprep.subr.bf16.mxu0 0
  %1086 = vmatpush1.bf16.msra.mxu0 0
  %1087 = vmatprep.mubr.bf16.mxu0 0
  %1088 = vmatmul.mubr.bf16.gmra.mrb[0].mxu0 %v1053
  %v1089 = vpop.f32.mrb[0].mxu0
  %v1090 = vadd.f32 0.0, %v1089
  %v1091 = vpop.f32.mrb[0].mxu0
  %v1092 = vpop.f32.mrb[0].mxu0
  %v1093 = vpop.f32.mrb[0].mxu0
  %1094 = vdwg.mxu0
  %v1096 = vrot.slane %v1090, 2
  %v1098 = vadd.f32 %v491, %v1096
  %v1099 = vxor.u32 %v1098, 2147483648
  %v1100 = vmul.f32 %v1099, 1.442695
  %v1101 = vpow.pop %v1100
  %v1102 = vadd.f32 %v1101, 1.0
  %v1103 = vrcp.pop %v1102
  %v1104 = vmul.f32 1.0, %v1103
  %v1105 = vtanh.pop %v1098
  %v1107 = vrot.slane %v1040, 6
  %v1109 = vmul.f32 %v1104, %v1107
  %1111 = vrot.lane.b32.xlu0 %v1105, 64
  %v1112 = vpop.permute.xlu0 %1111
  %v1114 = vmul.f32 %v1104, %v1112
  %1116 = vrot.lane.b32.xlu0 %v1114, 32
  %v1117 = vpop.permute.xlu0 %1116
  %v1119 = vadd.f32 %v1109, %v1117
  %v1120 = vtanh.pop %v1119
  %1122 = vrot.lane.b32.xlu0 %v1120, 64
  %v1123 = vpop.permute.xlu0 %1122
  %v1125 = vmul.f32 %v1104, %v1123
  %v1126 = vpack.c.bf16 %v1125, %v1125
  %v1128 = vrot.slane %v1126, 3
  %1129 = vrot.lane.b32.xlu0 %v1128, 32
  %v1130 = vpop.permute.xlu0 %1129
  %v1132 = vsel %vm154, %v1130, 0
  %1134 = vmatprep.subr.bf16.mxu0 0
  %1135 = vmatpush1.bf16.msra.mxu0 %v508
  %1136 = vmatprep.subr.bf16.mxu0 0
  %1137 = vmatpush1.bf16.msra.mxu0 %v509
  %1138 = vmatprep.subr.bf16.mxu0 0
  %1139 = vmatpush1.bf16.msra.mxu0 0
  %1140 = vmatprep.subr.bf16.mxu0 0
  %1141 = vmatpush1.bf16.msra.mxu0 0
  %1142 = vmatprep.subr.bf16.mxu0 0
  %1143 = vmatpush1.bf16.msra.mxu0 0
  %1144 = vmatprep.subr.bf16.mxu0 0
  %1145 = vmatpush1.bf16.msra.mxu0 0
  %1146 = vmatprep.subr.bf16.mxu0 0
  %1147 = vmatpush1.bf16.msra.mxu0 0
  %1148 = vmatprep.subr.bf16.mxu0 0
  %1149 = vmatpush1.bf16.msra.mxu0 0
  %1150 = vmatprep.subr.bf16.mxu0 0
  %1151 = vmatpush1.bf16.msra.mxu0 0
  %1152 = vmatprep.subr.bf16.mxu0 0
  %1153 = vmatpush1.bf16.msra.mxu0 0
  %1154 = vmatprep.subr.bf16.mxu0 0
  %1155 = vmatpush1.bf16.msra.mxu0 0
  %1156 = vmatprep.subr.bf16.mxu0 0
  %1157 = vmatpush1.bf16.msra.mxu0 0
  %1158 = vmatprep.subr.bf16.mxu0 0
  %1159 = vmatpush1.bf16.msra.mxu0 0
  %1160 = vmatprep.subr.bf16.mxu0 0
  %1161 = vmatpush1.bf16.msra.mxu0 0
  %1162 = vmatprep.subr.bf16.mxu0 0
  %1163 = vmatpush1.bf16.msra.mxu0 0
  %1164 = vmatprep.subr.bf16.mxu0 0
  %1165 = vmatpush1.bf16.msra.mxu0 0
  %1166 = vmatprep.mubr.bf16.mxu0 0
  %1167 = vmatmul.mubr.bf16.gmra.mrb[0].mxu0 %v1132
  %v1168 = vpop.f32.mrb[0].mxu0
  %v1169 = vadd.f32 0.0, %v1168
  %v1170 = vpop.f32.mrb[0].mxu0
  %v1171 = vpop.f32.mrb[0].mxu0
  %v1172 = vpop.f32.mrb[0].mxu0
  %1173 = vdwg.mxu0
  %v1174 = vadd.f32 %v496, %v1169
  %v1175 = vxor.u32 %v1174, 2147483648
  %v1176 = vmul.f32 %v1175, 1.442695
  %v1177 = vpow.pop %v1176
  %v1178 = vadd.f32 %v1177, 1.0
  %v1179 = vrcp.pop %v1178
  %v1180 = vmul.f32 1.0, %v1179
  %v1181 = vtanh.pop %v1174
  %v1183 = vrot.slane %v1119, 6
  %v1185 = vmul.f32 %v1180, %v1183
  %1187 = vrot.lane.b32.xlu0 %v1181, 64
  %v1188 = vpop.permute.xlu0 %1187
  %v1190 = vmul.f32 %v1180, %v1188
  %1192 = vrot.lane.b32.xlu0 %v1190, 32
  %v1193 = vpop.permute.xlu0 %1192
  %v1195 = vadd.f32 %v1185, %v1193
  %v1196 = vtanh.pop %v1195
  %1198 = vrot.lane.b32.xlu0 %v1196, 64
  %v1199 = vpop.permute.xlu0 %1198
  %v1201 = vmul.f32 %v1180, %v1199
  %v1202 = vpack.c.bf16 %v1201, %v1201
  %1204 = vrot.lane.b32.xlu0 %v1202, 32
  %v1205 = vpop.permute.xlu0 %1204
  %v1207 = vsel %vm154, %v1205, 0
  %1209 = vmatprep.subr.bf16.mxu0 0
  %1210 = vmatpush1.bf16.msra.mxu0 %v508
  %1211 = vmatprep.subr.bf16.mxu0 0
  %1212 = vmatpush1.bf16.msra.mxu0 %v509
  %1213 = vmatprep.subr.bf16.mxu0 0
  %1214 = vmatpush1.bf16.msra.mxu0 0
  %1215 = vmatprep.subr.bf16.mxu0 0
  %1216 = vmatpush1.bf16.msra.mxu0 0
  %1217 = vmatprep.subr.bf16.mxu0 0
  %1218 = vmatpush1.bf16.msra.mxu0 0
  %1219 = vmatprep.subr.bf16.mxu0 0
  %1220 = vmatpush1.bf16.msra.mxu0 0
  %1221 = vmatprep.subr.bf16.mxu0 0
  %1222 = vmatpush1.bf16.msra.mxu0 0
  %1223 = vmatprep.subr.bf16.mxu0 0
  %1224 = vmatpush1.bf16.msra.mxu0 0
  %1225 = vmatprep.subr.bf16.mxu0 0
  %1226 = vmatpush1.bf16.msra.mxu0 0
  %1227 = vmatprep.subr.bf16.mxu0 0
  %1228 = vmatpush1.bf16.msra.mxu0 0
  %1229 = vmatprep.subr.bf16.mxu0 0
  %1230 = vmatpush1.bf16.msra.mxu0 0
  %1231 = vmatprep.subr.bf16.mxu0 0
  %1232 = vmatpush1.bf16.msra.mxu0 0
  %1233 = vmatprep.subr.bf16.mxu0 0
  %1234 = vmatpush1.bf16.msra.mxu0 0
  %1235 = vmatprep.subr.bf16.mxu0 0
  %1236 = vmatpush1.bf16.msra.mxu0 0
  %1237 = vmatprep.subr.bf16.mxu0 0
  %1238 = vmatpush1.bf16.msra.mxu0 0
  %1239 = vmatprep.subr.bf16.mxu0 0
  %1240 = vmatpush1.bf16.msra.mxu0 0
  %1241 = vmatprep.mubr.bf16.mxu0 0
  %1242 = vmatmul.mubr.bf16.gmra.mrb[0].mxu0 %v1207
  %v1243 = vpop.f32.mrb[0].mxu0
  %v1244 = vadd.f32 0.0, %v1243
  %v1245 = vpop.f32.mrb[0].mxu0
  %v1246 = vpop.f32.mrb[0].mxu0
  %v1247 = vpop.f32.mrb[0].mxu0
  %1248 = vdwg.mxu0
  %v1250 = vrot.slane %v1244, 6
  %v1252 = vadd.f32 %v496, %v1250
  %v1253 = vxor.u32 %v1252, 2147483648
  %v1254 = vmul.f32 %v1253, 1.442695
  %v1255 = vpow.pop %v1254
  %v1256 = vadd.f32 %v1255, 1.0
  %v1257 = vrcp.pop %v1256
  %v1258 = vmul.f32 1.0, %v1257
  %v1259 = vtanh.pop %v1252
  %v1261 = vrot.slane %v1195, 6
  %v1263 = vmul.f32 %v1258, %v1261
  %1265 = vrot.lane.b32.xlu0 %v1259, 64
  %v1266 = vpop.permute.xlu0 %1265
  %v1268 = vmul.f32 %v1258, %v1266
  %1270 = vrot.lane.b32.xlu0 %v1268, 32
  %v1271 = vpop.permute.xlu0 %1270
  %v1273 = vadd.f32 %v1263, %v1271
  %v1274 = vtanh.pop %v1273
  %1276 = vrot.lane.b32.xlu0 %v1274, 64
  %v1277 = vpop.permute.xlu0 %1276
  %v1279 = vmul.f32 %v1258, %v1277
  %v1280 = vpack.c.bf16 %v1279, %v1279
  %v1282 = vrot.slane %v1280, 1
  %1283 = vrot.lane.b32.xlu0 %v1282, 32
  %v1284 = vpop.permute.xlu0 %1283
  %v1286 = vsel %vm154, %v1284, 0
  %1288 = vmatprep.subr.bf16.mxu0 0
  %1289 = vmatpush1.bf16.msra.mxu0 %v508
  %1290 = vmatprep.subr.bf16.mxu0 0
  %1291 = vmatpush1.bf16.msra.mxu0 %v509
  %1292 = vmatprep.subr.bf16.mxu0 0
  %1293 = vmatpush1.bf16.msra.mxu0 0
  %1294 = vmatprep.subr.bf16.mxu0 0
  %1295 = vmatpush1.bf16.msra.mxu0 0
  %1296 = vmatprep.subr.bf16.mxu0 0
  %1297 = vmatpush1.bf16.msra.mxu0 0
  %1298 = vmatprep.subr.bf16.mxu0 0
  %1299 = vmatpush1.bf16.msra.mxu0 0
  %1300 = vmatprep.subr.bf16.mxu0 0
  %1301 = vmatpush1.bf16.msra.mxu0 0
  %1302 = vmatprep.subr.bf16.mxu0 0
  %1303 = vmatpush1.bf16.msra.mxu0 0
  %1304 = vmatprep.subr.bf16.mxu0 0
  %1305 = vmatpush1.bf16.msra.mxu0 0
  %1306 = vmatprep.subr.bf16.mxu0 0
  %1307 = vmatpush1.bf16.msra.mxu0 0
  %1308 = vmatprep.subr.bf16.mxu0 0
  %1309 = vmatpush1.bf16.msra.mxu0 0
  %1310 = vmatprep.subr.bf16.mxu0 0
  %1311 = vmatpush1.bf16.msra.mxu0 0
  %1312 = vmatprep.subr.bf16.mxu0 0
  %1313 = vmatpush1.bf16.msra.mxu0 0
  %1314 = vmatprep.subr.bf16.mxu0 0
  %1315 = vmatpush1.bf16.msra.mxu0 0
  %1316 = vmatprep.subr.bf16.mxu0 0
  %1317 = vmatpush1.bf16.msra.mxu0 0
  %1318 = vmatprep.subr.bf16.mxu0 0
  %1319 = vmatpush1.bf16.msra.mxu0 0
  %1320 = vmatprep.mubr.bf16.mxu0 0
  %1321 = vmatmul.mubr.bf16.gmra.mrb[0].mxu0 %v1286
  %v1322 = vpop.f32.mrb[0].mxu0
  %v1323 = vadd.f32 0.0, %v1322
  %v1324 = vpop.f32.mrb[0].mxu0
  %v1325 = vpop.f32.mrb[0].mxu0
  %v1326 = vpop.f32.mrb[0].mxu0
  %1327 = vdwg.mxu0
  %v1329 = vrot.slane %v1323, 4
  %v1331 = vadd.f32 %v496, %v1329
  %v1332 = vxor.u32 %v1331, 2147483648
  %v1333 = vmul.f32 %v1332, 1.442695
  %v1334 = vpow.pop %v1333
  %v1335 = vadd.f32 %v1334, 1.0
  %v1336 = vrcp.pop %v1335
  %v1337 = vmul.f32 1.0, %v1336
  %v1338 = vtanh.pop %v1331
  %v1340 = vrot.slane %v1273, 6
  %v1342 = vmul.f32 %v1337, %v1340
  %1344 = vrot.lane.b32.xlu0 %v1338, 64
  %v1345 = vpop.permute.xlu0 %1344
  %v1347 = vmul.f32 %v1337, %v1345
  %1349 = vrot.lane.b32.xlu0 %v1347, 32
  %v1350 = vpop.permute.xlu0 %1349
  %v1352 = vadd.f32 %v1342, %v1350
  %v1353 = vtanh.pop %v1352
  %1355 = vrot.lane.b32.xlu0 %v1353, 64
  %v1356 = vpop.permute.xlu0 %1355
  %v1358 = vmul.f32 %v1337, %v1356
  %v1359 = vpack.c.bf16 %v1358, %v1358
  %v1361 = vrot.slane %v1359, 2
  %1362 = vrot.lane.b32.xlu0 %v1361, 32
  %v1363 = vpop.permute.xlu0 %1362
  %v1365 = vsel %vm154, %v1363, 0
  %1367 = vmatprep.subr.bf16.mxu0 0
  %1368 = vmatpush1.bf16.msra.mxu0 %v508
  %1369 = vmatprep.subr.bf16.mxu0 0
  %1370 = vmatpush1.bf16.msra.mxu0 %v509
  %1371 = vmatprep.subr.bf16.mxu0 0
  %1372 = vmatpush1.bf16.msra.mxu0 0
  %1373 = vmatprep.subr.bf16.mxu0 0
  %1374 = vmatpush1.bf16.msra.mxu0 0
  %1375 = vmatprep.subr.bf16.mxu0 0
  %1376 = vmatpush1.bf16.msra.mxu0 0
  %1377 = vmatprep.subr.bf16.mxu0 0
  %1378 = vmatpush1.bf16.msra.mxu0 0
  %1379 = vmatprep.subr.bf16.mxu0 0
  %1380 = vmatpush1.bf16.msra.mxu0 0
  %1381 = vmatprep.subr.bf16.mxu0 0
  %1382 = vmatpush1.bf16.msra.mxu0 0
  %1383 = vmatprep.subr.bf16.mxu0 0
  %1384 = vmatpush1.bf16.msra.mxu0 0
  %1385 = vmatprep.subr.bf16.mxu0 0
  %1386 = vmatpush1.bf16.msra.mxu0 0
  %1387 = vmatprep.subr.bf16.mxu0 0
  %1388 = vmatpush1.bf16.msra.mxu0 0
  %1389 = vmatprep.subr.bf16.mxu0 0
  %1390 = vmatpush1.bf16.msra.mxu0 0
  %1391 = vmatprep.subr.bf16.mxu0 0
  %1392 = vmatpush1.bf16.msra.mxu0 0
  %1393 = vmatprep.subr.bf16.mxu0 0
  %1394 = vmatpush1.bf16.msra.mxu0 0
  %1395 = vmatprep.subr.bf16.mxu0 0
  %1396 = vmatpush1.bf16.msra.mxu0 0
  %1397 = vmatprep.subr.bf16.mxu0 0
  %1398 = vmatpush1.bf16.msra.mxu0 0
  %1399 = vmatprep.mubr.bf16.mxu0 0
  %1400 = vmatmul.mubr.bf16.gmra.mrb[0].mxu0 %v1365
  %v1401 = vpop.f32.mrb[0].mxu0
  %v1402 = vadd.f32 0.0, %v1401
  %v1403 = vpop.f32.mrb[0].mxu0
  %v1404 = vpop.f32.mrb[0].mxu0
  %v1405 = vpop.f32.mrb[0].mxu0
  %1406 = vdwg.mxu0
  %v1408 = vrot.slane %v1402, 2
  %v1410 = vadd.f32 %v496, %v1408
  %v1411 = vxor.u32 %v1410, 2147483648
  %v1412 = vmul.f32 %v1411, 1.442695
  %v1413 = vpow.pop %v1412
  %v1414 = vadd.f32 %v1413, 1.0
  %v1415 = vrcp.pop %v1414
  %v1416 = vmul.f32 1.0, %v1415
  %v1417 = vtanh.pop %v1410
  %v1419 = vrot.slane %v1352, 6
  %v1421 = vmul.f32 %v1416, %v1419
  %1423 = vrot.lane.b32.xlu0 %v1417, 64
  %v1424 = vpop.permute.xlu0 %1423
  %v1426 = vmul.f32 %v1416, %v1424
  %1428 = vrot.lane.b32.xlu0 %v1426, 32
  %v1429 = vpop.permute.xlu0 %1428
  %v1431 = vadd.f32 %v1421, %v1429
  %v1432 = vtanh.pop %v1431
  %1434 = vrot.lane.b32.xlu0 %v1432, 64
  %v1435 = vpop.permute.xlu0 %1434
  %v1437 = vmul.f32 %v1416, %v1435
  %v1438 = vpack.c.bf16 %v1437, %v1437
  %v1440 = vrot.slane %v1438, 3
  %1441 = vrot.lane.b32.xlu0 %v1440, 32
  %v1442 = vpop.permute.xlu0 %1441
  %v1444 = vsel %vm154, %v1442, 0
  %1446 = vmatprep.subr.bf16.mxu0 0
  %1447 = vmatpush1.bf16.msra.mxu0 %v508
  %1448 = vmatprep.subr.bf16.mxu0 0
  %1449 = vmatpush1.bf16.msra.mxu0 %v509
  %1450 = vmatprep.subr.bf16.mxu0 0
  %1451 = vmatpush1.bf16.msra.mxu0 0
  %1452 = vmatprep.subr.bf16.mxu0 0
  %1453 = vmatpush1.bf16.msra.mxu0 0
  %1454 = vmatprep.subr.bf16.mxu0 0
  %1455 = vmatpush1.bf16.msra.mxu0 0
  %1456 = vmatprep.subr.bf16.mxu0 0
  %1457 = vmatpush1.bf16.msra.mxu0 0
  %1458 = vmatprep.subr.bf16.mxu0 0
  %1459 = vmatpush1.bf16.msra.mxu0 0
  %1460 = vmatprep.subr.bf16.mxu0 0
  %1461 = vmatpush1.bf16.msra.mxu0 0
  %1462 = vmatprep.subr.bf16.mxu0 0
  %1463 = vmatpush1.bf16.msra.mxu0 0
  %1464 = vmatprep.subr.bf16.mxu0 0
  %1465 = vmatpush1.bf16.msra.mxu0 0
  %1466 = vmatprep.subr.bf16.mxu0 0
  %1467 = vmatpush1.bf16.msra.mxu0 0
  %1468 = vmatprep.subr.bf16.mxu0 0
  %1469 = vmatpush1.bf16.msra.mxu0 0
  %1470 = vmatprep.subr.bf16.mxu0 0
  %1471 = vmatpush1.bf16.msra.mxu0 0
  %1472 = vmatprep.subr.bf16.mxu0 0
  %1473 = vmatpush1.bf16.msra.mxu0 0
  %1474 = vmatprep.subr.bf16.mxu0 0
  %1475 = vmatpush1.bf16.msra.mxu0 0
  %1476 = vmatprep.subr.bf16.mxu0 0
  %1477 = vmatpush1.bf16.msra.mxu0 0
  %1478 = vmatprep.mubr.bf16.mxu0 0
  %1479 = vmatmul.mubr.bf16.gmra.mrb[0].mxu0 %v1444
  %v1480 = vpop.f32.mrb[0].mxu0
  %v1481 = vadd.f32 0.0, %v1480
  %v1482 = vpop.f32.mrb[0].mxu0
  %v1483 = vpop.f32.mrb[0].mxu0
  %v1484 = vpop.f32.mrb[0].mxu0
  %1485 = vdwg.mxu0
  %v1486 = vadd.f32 %v501, %v1481
  %v1487 = vxor.u32 %v1486, 2147483648
  %v1488 = vmul.f32 %v1487, 1.442695
  %v1489 = vpow.pop %v1488
  %v1490 = vadd.f32 %v1489, 1.0
  %v1491 = vrcp.pop %v1490
  %v1492 = vmul.f32 1.0, %v1491
  %v1493 = vtanh.pop %v1486
  %v1495 = vrot.slane %v1431, 6
  %v1497 = vmul.f32 %v1492, %v1495
  %1499 = vrot.lane.b32.xlu0 %v1493, 64
  %v1500 = vpop.permute.xlu0 %1499
  %v1502 = vmul.f32 %v1492, %v1500
  %1504 = vrot.lane.b32.xlu0 %v1502, 32
  %v1505 = vpop.permute.xlu0 %1504
  %v1507 = vadd.f32 %v1497, %v1505
  %v1508 = vtanh.pop %v1507
  %1510 = vrot.lane.b32.xlu0 %v1508, 64
  %v1511 = vpop.permute.xlu0 %1510
  %v1513 = vmul.f32 %v1492, %v1511
  %v1514 = vpack.c.bf16 %v1513, %v1513
  %1516 = vrot.lane.b32.xlu0 %v1514, 32
  %v1517 = vpop.permute.xlu0 %1516
  %v1519 = vsel %vm154, %v1517, 0
  %1521 = vmatprep.subr.bf16.mxu0 0
  %1522 = vmatpush1.bf16.msra.mxu0 %v508
  %1523 = vmatprep.subr.bf16.mxu0 0
  %1524 = vmatpush1.bf16.msra.mxu0 %v509
  %1525 = vmatprep.subr.bf16.mxu0 0
  %1526 = vmatpush1.bf16.msra.mxu0 0
  %1527 = vmatprep.subr.bf16.mxu0 0
  %1528 = vmatpush1.bf16.msra.mxu0 0
  %1529 = vmatprep.subr.bf16.mxu0 0
  %1530 = vmatpush1.bf16.msra.mxu0 0
  %1531 = vmatprep.subr.bf16.mxu0 0
  %1532 = vmatpush1.bf16.msra.mxu0 0
  %1533 = vmatprep.subr.bf16.mxu0 0
  %1534 = vmatpush1.bf16.msra.mxu0 0
  %1535 = vmatprep.subr.bf16.mxu0 0
  %1536 = vmatpush1.bf16.msra.mxu0 0
  %1537 = vmatprep.subr.bf16.mxu0 0
  %1538 = vmatpush1.bf16.msra.mxu0 0
  %1539 = vmatprep.subr.bf16.mxu0 0
  %1540 = vmatpush1.bf16.msra.mxu0 0
  %1541 = vmatprep.subr.bf16.mxu0 0
  %1542 = vmatpush1.bf16.msra.mxu0 0
  %1543 = vmatprep.subr.bf16.mxu0 0
  %1544 = vmatpush1.bf16.msra.mxu0 0
  %1545 = vmatprep.subr.bf16.mxu0 0
  %1546 = vmatpush1.bf16.msra.mxu0 0
  %1547 = vmatprep.subr.bf16.mxu0 0
  %1548 = vmatpush1.bf16.msra.mxu0 0
  %1549 = vmatprep.subr.bf16.mxu0 0
  %1550 = vmatpush1.bf16.msra.mxu0 0
  %1551 = vmatprep.subr.bf16.mxu0 0
  %1552 = vmatpush1.bf16.msra.mxu0 0
  %1553 = vmatprep.mubr.bf16.mxu0 0
  %1554 = vmatmul.mubr.bf16.gmra.mrb[0].mxu0 %v1519
  %v1555 = vpop.f32.mrb[0].mxu0
  %v1556 = vadd.f32 0.0, %v1555
  %v1557 = vpop.f32.mrb[0].mxu0
  %v1558 = vpop.f32.mrb[0].mxu0
  %v1559 = vpop.f32.mrb[0].mxu0
  %1560 = vdwg.mxu0
  %v1562 = vrot.slane %v1556, 6
  %v1564 = vadd.f32 %v501, %v1562
  %v1565 = vxor.u32 %v1564, 2147483648
  %v1566 = vmul.f32 %v1565, 1.442695
  %v1567 = vpow.pop %v1566
  %v1568 = vadd.f32 %v1567, 1.0
  %v1569 = vrcp.pop %v1568
  %v1570 = vmul.f32 1.0, %v1569
  %v1571 = vtanh.pop %v1564
  %v1573 = vrot.slane %v1507, 6
  %v1575 = vmul.f32 %v1570, %v1573
  %1577 = vrot.lane.b32.xlu0 %v1571, 64
  %v1578 = vpop.permute.xlu0 %1577
  %v1580 = vmul.f32 %v1570, %v1578
  %1582 = vrot.lane.b32.xlu0 %v1580, 32
  %v1583 = vpop.permute.xlu0 %1582
  %v1585 = vadd.f32 %v1575, %v1583
  %v1586 = vtanh.pop %v1585
  %1588 = vrot.lane.b32.xlu0 %v1586, 64
  %v1589 = vpop.permute.xlu0 %1588
  %v1591 = vmul.f32 %v1570, %v1589
  %v1592 = vpack.c.bf16 %v1591, %v1591
  %v1594 = vrot.slane %v1592, 1
  %1595 = vrot.lane.b32.xlu0 %v1594, 32
  %v1596 = vpop.permute.xlu0 %1595
  %v1598 = vsel %vm154, %v1596, 0
  %1600 = vmatprep.subr.bf16.mxu0 0
  %1601 = vmatpush1.bf16.msra.mxu0 %v508
  %1602 = vmatprep.subr.bf16.mxu0 0
  %1603 = vmatpush1.bf16.msra.mxu0 %v509
  %1604 = vmatprep.subr.bf16.mxu0 0
  %1605 = vmatpush1.bf16.msra.mxu0 0
  %1606 = vmatprep.subr.bf16.mxu0 0
  %1607 = vmatpush1.bf16.msra.mxu0 0
  %1608 = vmatprep.subr.bf16.mxu0 0
  %1609 = vmatpush1.bf16.msra.mxu0 0
  %1610 = vmatprep.subr.bf16.mxu0 0
  %1611 = vmatpush1.bf16.msra.mxu0 0
  %1612 = vmatprep.subr.bf16.mxu0 0
  %1613 = vmatpush1.bf16.msra.mxu0 0
  %1614 = vmatprep.subr.bf16.mxu0 0
  %1615 = vmatpush1.bf16.msra.mxu0 0
  %1616 = vmatprep.subr.bf16.mxu0 0
  %1617 = vmatpush1.bf16.msra.mxu0 0
  %1618 = vmatprep.subr.bf16.mxu0 0
  %1619 = vmatpush1.bf16.msra.mxu0 0
  %1620 = vmatprep.subr.bf16.mxu0 0
  %1621 = vmatpush1.bf16.msra.mxu0 0
  %1622 = vmatprep.subr.bf16.mxu0 0
  %1623 = vmatpush1.bf16.msra.mxu0 0
  %1624 = vmatprep.subr.bf16.mxu0 0
  %1625 = vmatpush1.bf16.msra.mxu0 0
  %1626 = vmatprep.subr.bf16.mxu0 0
  %1627 = vmatpush1.bf16.msra.mxu0 0
  %1628 = vmatprep.subr.bf16.mxu0 0
  %1629 = vmatpush1.bf16.msra.mxu0 0
  %1630 = vmatprep.subr.bf16.mxu0 0
  %1631 = vmatpush1.bf16.msra.mxu0 0
  %1632 = vmatprep.mubr.bf16.mxu0 0
  %1633 = vmatmul.mubr.bf16.gmra.mrb[0].mxu0 %v1598
  %v1634 = vpop.f32.mrb[0].mxu0
  %v1635 = vadd.f32 0.0, %v1634
  %v1636 = vpop.f32.mrb[0].mxu0
  %v1637 = vpop.f32.mrb[0].mxu0
  %v1638 = vpop.f32.mrb[0].mxu0
  %1639 = vdwg.mxu0
  %v1641 = vrot.slane %v1635, 4
  %v1643 = vadd.f32 %v501, %v1641
  %v1644 = vxor.u32 %v1643, 2147483648
  %v1645 = vmul.f32 %v1644, 1.442695
  %v1646 = vpow.pop %v1645
  %v1647 = vadd.f32 %v1646, 1.0
  %v1648 = vrcp.pop %v1647
  %v1649 = vmul.f32 1.0, %v1648
  %v1650 = vtanh.pop %v1643
  %v1652 = vrot.slane %v1585, 6
  %v1654 = vmul.f32 %v1649, %v1652
  %1656 = vrot.lane.b32.xlu0 %v1650, 64
  %v1657 = vpop.permute.xlu0 %1656
  %v1659 = vmul.f32 %v1649, %v1657
  %1661 = vrot.lane.b32.xlu0 %v1659, 32
  %v1662 = vpop.permute.xlu0 %1661
  %v1664 = vadd.f32 %v1654, %v1662
  %v1665 = vtanh.pop %v1664
  %1667 = vrot.lane.b32.xlu0 %v1665, 64
  %v1668 = vpop.permute.xlu0 %1667
  %v1670 = vmul.f32 %v1649, %v1668
  %v1671 = vpack.c.bf16 %v1670, %v1670
  %v1673 = vrot.slane %v1671, 2
  %1674 = vrot.lane.b32.xlu0 %v1673, 32
  %v1675 = vpop.permute.xlu0 %1674
  %v1677 = vsel %vm154, %v1675, 0
  %1679 = vmatprep.subr.bf16.mxu0 0
  %1680 = vmatpush1.bf16.msra.mxu0 %v508
  %1681 = vmatprep.subr.bf16.mxu0 0
  %1682 = vmatpush1.bf16.msra.mxu0 %v509
  %1683 = vmatprep.subr.bf16.mxu0 0
  %1684 = vmatpush1.bf16.msra.mxu0 0
  %1685 = vmatprep.subr.bf16.mxu0 0
  %1686 = vmatpush1.bf16.msra.mxu0 0
  %1687 = vmatprep.subr.bf16.mxu0 0
  %1688 = vmatpush1.bf16.msra.mxu0 0
  %1689 = vmatprep.subr.bf16.mxu0 0
  %1690 = vmatpush1.bf16.msra.mxu0 0
  %1691 = vmatprep.subr.bf16.mxu0 0
  %1692 = vmatpush1.bf16.msra.mxu0 0
  %1693 = vmatprep.subr.bf16.mxu0 0
  %1694 = vmatpush1.bf16.msra.mxu0 0
  %1695 = vmatprep.subr.bf16.mxu0 0
  %1696 = vmatpush1.bf16.msra.mxu0 0
  %1697 = vmatprep.subr.bf16.mxu0 0
  %1698 = vmatpush1.bf16.msra.mxu0 0
  %1699 = vmatprep.subr.bf16.mxu0 0
  %1700 = vmatpush1.bf16.msra.mxu0 0
  %1701 = vmatprep.subr.bf16.mxu0 0
  %1702 = vmatpush1.bf16.msra.mxu0 0
  %1703 = vmatprep.subr.bf16.mxu0 0
  %1704 = vmatpush1.bf16.msra.mxu0 0
  %1705 = vmatprep.subr.bf16.mxu0 0
  %1706 = vmatpush1.bf16.msra.mxu0 0
  %1707 = vmatprep.subr.bf16.mxu0 0
  %1708 = vmatpush1.bf16.msra.mxu0 0
  %1709 = vmatprep.subr.bf16.mxu0 0
  %1710 = vmatpush1.bf16.msra.mxu0 0
  %1711 = vmatprep.mubr.bf16.mxu0 0
  %1712 = vmatmul.mubr.bf16.gmra.mrb[0].mxu0 %v1677
  %v1713 = vpop.f32.mrb[0].mxu0
  %v1714 = vadd.f32 0.0, %v1713
  %v1715 = vpop.f32.mrb[0].mxu0
  %v1716 = vpop.f32.mrb[0].mxu0
  %v1717 = vpop.f32.mrb[0].mxu0
  %1718 = vdwg.mxu0
  %v1720 = vrot.slane %v1714, 2
  %v1722 = vadd.f32 %v501, %v1720
  %v1723 = vxor.u32 %v1722, 2147483648
  %v1724 = vmul.f32 %v1723, 1.442695
  %v1725 = vpow.pop %v1724
  %v1726 = vadd.f32 %v1725, 1.0
  %v1727 = vrcp.pop %v1726
  %v1728 = vmul.f32 1.0, %v1727
  %v1729 = vtanh.pop %v1722
  %v1731 = vrot.slane %v1664, 6
  %v1733 = vmul.f32 %v1728, %v1731
  %1735 = vrot.lane.b32.xlu0 %v1729, 64
  %v1736 = vpop.permute.xlu0 %1735
  %v1738 = vmul.f32 %v1728, %v1736
  %1740 = vrot.lane.b32.xlu0 %v1738, 32
  %v1741 = vpop.permute.xlu0 %1740
  %v1743 = vadd.f32 %v1733, %v1741
  %v1744 = vtanh.pop %v1743
  %1746 = vrot.lane.b32.xlu0 %v1744, 64
  %v1747 = vpop.permute.xlu0 %1746
  %v1749 = vmul.f32 %v1728, %v1747
  %v1750 = vsel %vm132, %v577, %v655
  %v1751 = vsel %vm52, %v1750, %v734
  %v1752 = vsel %vm34, %v1751, %v813
  %v1753 = vsel %vm132, %v889, %v967
  %v1754 = vsel %vm52, %v1753, %v1046
  %v1755 = vsel %vm34, %v1754, %v1125
  %v1756 = vsel %vm132, %v1201, %v1279
  %v1757 = vsel %vm52, %v1756, %v1358
  %v1758 = vsel %vm34, %v1757, %v1437
  %v1759 = vsel %vm132, %v1513, %v1591
  %v1760 = vsel %vm52, %v1759, %v1670
  %v1761 = vsel %vm34, %v1760, %v1749
  %1766 = vrot.lane.b32.xlu0 %v1752, 32
  %v1767 = vpop.permute.xlu0 %1766
  %1768 = vrot.lane.b32.xlu0 %v1755, 32
  %v1769 = vpop.permute.xlu0 %1768
  %1770 = vrot.lane.b32.xlu0 %v1758, 32
  %v1771 = vpop.permute.xlu0 %1770
  %1772 = vrot.lane.b32.xlu0 %v1761, 32
  %v1773 = vpop.permute.xlu0 %1772
  %v1778 = vadd.f32 %v66, %v1767
  %v1779 = vadd.f32 %v67, %v1769
  %v1780 = vadd.f32 %v68, %v1771
  %v1781 = vadd.f32 %v69, %v1773
  %1782 = vst.msk [vmem:[%s6] sm:$0xff] %vm154, %v1778
  %1783 = vst.msk [vmem:[%s6 + $0x8] sm:$0xff] %vm154, %v1779
  %1784 = vst.msk [vmem:[%s6 + $0x10] sm:$0xff] %vm154, %v1780
  %1785 = vst.msk [vmem:[%s6 + $0x18] sm:$0xff] %vm154, %v1781
  // Predicated region
  $region26: #{resdual_block.1} parent=0 // pred_check
    _
  $region27: #{resdual_block.1} parent=0 // pred_check_branch
    %1787 = sbr.rel (0) target = $region29
  $region28: #{resdual_block.1} parent=0 // pred_region
    _
  $region29: #{resdual_block.1} parent=0 // pred_fallthru
    _
  // Predicated region
  $region30: #{resdual_block.1} parent=0 // pred_check
    _
  $region31: #{resdual_block.1} parent=0 // pred_check_branch
    %1789 = sbr.rel (0) target = $region33
  $region32: #{resdual_block.1} parent=0 // pred_region
    _
  $region33: #{resdual_block.1} parent=0 // pred_fallthru
    _

</llo_original>
